<compile_context>
chip_gen: v7x
topology: tpu7x:2x2x1
jax: 0.10.0
libtpu: 0.0.40
codegen_flags: <defaults>
</compile_context>

<pallas_src>
import functools

import jax
import jax.numpy as jnp
import numpy as np
from jax.experimental import pallas as pl
from jax.experimental.pallas import tpu as pltpu

LN_EPS = 1e-5  # PyTorch nn.LayerNorm default


def _layernorm(x, gamma, beta):
    mu = jnp.mean(x, axis=-1, keepdims=True)
    xc = x - mu
    var = jnp.mean(xc * xc, axis=-1, keepdims=True)
    return xc * jax.lax.rsqrt(var + LN_EPS) * gamma + beta


# ---------------------------------------------------------------------------
# Kernel 1: LayerNorm1 + Q/K/V projections (softmax scale pre-folded into q).
# ---------------------------------------------------------------------------
def qkv_kernel(x_ref, g1_ref, b1_ref, wq_ref, bq_ref, wk_ref, bk_ref,
               wv_ref, bv_ref, q_ref, k_ref, v_ref):
    x = x_ref[0].astype(jnp.float32)                        # (TN, C)
    xn = _layernorm(x, g1_ref[...], b1_ref[...]).astype(jnp.bfloat16)
    # Three separate dots; each (TN, C) result is cast & stored as soon as it
    # is produced, so no (TN, 3C) f32 intermediate is ever materialized.
    q = jnp.dot(xn, wq_ref[...], preferred_element_type=jnp.float32) + bq_ref[...]
    q_ref[0] = q.astype(q_ref.dtype)
    k = jnp.dot(xn, wk_ref[...], preferred_element_type=jnp.float32) + bk_ref[...]
    k_ref[0] = k.astype(k_ref.dtype)
    v = jnp.dot(xn, wv_ref[...], preferred_element_type=jnp.float32) + bv_ref[...]
    v_ref[0] = v.astype(v_ref.dtype)


# ---------------------------------------------------------------------------
# Kernel 2: query-tiled attention + grouped proj + residual + LN2 + MLP.
# ---------------------------------------------------------------------------
def attn_mlp_kernel(x_ref, q_ref, k_ref, v_ref,
                    wproj_ref, bproj_ref, g2_ref, b2_ref,
                    w1_ref, bm1_ref, w2_ref, bm2_ref,
                    o_ref, attn_ref, *, num_heads):
    shortcut = x_ref[0].astype(jnp.float32)                 # (TQ, C)
    q = q_ref[0]                                            # (TQ, C) bf16, pre-scaled
    k = k_ref[0]                                            # (N,  C) bf16
    v = v_ref[0]                                            # (N,  C) bf16
    TQ, C = q.shape
    hd = C // num_heads

    # Per-head attention.  Softmax normalization is applied AFTER the PV
    # matmul (TQ*hd multiplies/head instead of TQ*N); exp(s-max) <= 1 so the
    # bf16 cast of the unnormalized probabilities is safe.  Each head's
    # output lands in the (TQ, C) bf16 scratch so the output projection below
    # is a single full-depth (K=C) MXU matmul.
    for h in range(num_heads):           # static unroll -> static lane slices
        lo, hi = h * hd, (h + 1) * hd
        s = jax.lax.dot_general(q[:, lo:hi], k[:, lo:hi],
                                (((1,), (1,)), ((), ())),
                                preferred_element_type=jnp.float32)   # (TQ, N)
        s = s - jnp.max(s, axis=-1, keepdims=True)
        p = jnp.exp(s)
        rs = jnp.sum(p, axis=-1, keepdims=True)                       # (TQ, 1)
        oh = jnp.dot(p.astype(jnp.bfloat16), v[:, lo:hi],
                     preferred_element_type=jnp.float32)              # (TQ, hd)
        attn_ref[:, lo:hi] = (oh * pl.reciprocal(rs, approx=True)
                              ).astype(jnp.bfloat16)

    acc = jnp.dot(attn_ref[...], wproj_ref[...],
                  preferred_element_type=jnp.float32)                 # (TQ, C)
    x1 = shortcut + acc + bproj_ref[...]                   # drop_path == Identity

    xn2 = _layernorm(x1, g2_ref[...], b2_ref[...])
    h1 = jnp.dot(xn2.astype(jnp.bfloat16), w1_ref[...],
                 preferred_element_type=jnp.float32) + bm1_ref[...]
    h1 = jax.nn.gelu(h1, approximate=False)                # exact erf-GELU == nn.GELU()
    m = jnp.dot(h1.astype(jnp.bfloat16), w2_ref[...],
                preferred_element_type=jnp.float32) + bm2_ref[...]
    o_ref[0] = (x1 + m).astype(o_ref.dtype)


# ---------------------------------------------------------------------------
# Wrapper helpers.
# ---------------------------------------------------------------------------
def _vmem_capacity_bytes():
    try:
        return int(pltpu.get_tpu_info().vmem_capacity_bytes)
    except Exception:
        return 64 * 1024 * 1024      # conservative: v7x per-TensorCore VMEM


def _tile_candidates(n, target, align=16):
    """Divisors of n that are multiples of `align` (bf16 (16,128) sublane
    packing), descending, capped at `target`; falls back to n (full extent)."""
    cands = [d for d in range(align, min(n, target) + 1, align) if n % d == 0]
    if not cands:
        cands = [n]
    return sorted(set(cands), reverse=True)


def _call1_vmem_bytes(TN, C, single_w):
    nbuf_w = 1 if single_w else 2
    tiles = 2 * (4 * TN * C)                       # x f32 in-tile (double-buffered)
    outs = 2 * (3 * 2 * TN * C)                    # q/k/v bf16 out-tiles
    weights = nbuf_w * (3 * 2 * C * C + 8 * 4 * C)  # wq/wk/wv bf16 + small f32
    interm = 3 * 4 * TN * C                        # live f32 intermediates (rough)
    return tiles + outs + weights + interm


def _call2_vmem_bytes(TQ, N, C, hid, single_w):
    nbuf_w = 1 if single_w else 2
    tiles = 2 * (4 * TQ * C + 2 * TQ * C)          # x f32 + q bf16 in-tiles
    outs = 2 * (4 * TQ * C)                        # out tile
    kv = 2 * (2 * 2 * N * C)                       # full-N K + V bf16 (double-buffered over b)
    weights = nbuf_w * (2 * (C * C + 2 * C * hid) + 8 * 4 * C + 4 * hid)
    scratch = 2 * TQ * C                           # per-head staging scratch
    interm = 4 * TQ * N + 4 * TQ * hid + 3 * 4 * TQ * C
    return tiles + outs + kv + weights + scratch + interm


def _const_spec(shape, single_buffer):
    """Full-array BlockSpec with constant block index over the whole grid."""
    nd = len(shape)
    index_map = lambda b, t, _nd=nd: (0,) * _nd
    if single_buffer:
        # Block index never changes -> single-buffer to halve resident VMEM.
        return pl.BlockSpec(shape, index_map, pipeline_mode=pl.Buffered(1))
    return pl.BlockSpec(shape, index_map)


def _block_forward_impl(x, params, num_heads, single_buffer_weights):
    B, H, W, C = x.shape
    N = H * W
    hid = params["w1"].shape[1]
    xf = x.reshape(B, N, C)
    sbw = single_buffer_weights

    # Fold the softmax scale into the q projection (f32 fold, then bf16 cast)
    # so the kernel never does a per-token `q * scale` VPU pass.
    scale = (C // num_heads) ** (-0.5)
    wqkv = params["wqkv"].astype(jnp.float32)
    bqkv = params["bqkv"].astype(jnp.float32)
    wq = (wqkv[:, :C] * scale).astype(jnp.bfloat16)
    wk = wqkv[:, C:2 * C].astype(jnp.bfloat16)
    wv = wqkv[:, 2 * C:].astype(jnp.bfloat16)
    bq = bqkv[:, :C] * scale
    bk = bqkv[:, C:2 * C]
    bv = bqkv[:, 2 * C:]
    # bf16 weights (MXU-native operands, half the resident VMEM); biases and
    # LayerNorm affine parameters stay f32.
    wproj = params["wproj"].astype(jnp.bfloat16)
    w1 = params["w1"].astype(jnp.bfloat16)
    w2 = params["w2"].astype(jnp.bfloat16)
    g1 = params["g1"].astype(jnp.float32)
    b1 = params["b1"].astype(jnp.float32)
    g2 = params["g2"].astype(jnp.float32)
    b2 = params["b2"].astype(jnp.float32)
    bproj = params["bproj"].astype(jnp.float32)
    bm1 = params["bm1"].astype(jnp.float32)
    bm2 = params["bm2"].astype(jnp.float32)

    # Per-generation VMEM budget: ~82% of physical, capped at 110 MiB
    # (v5e/v6e ~105 MiB; v7x ~52 MiB).  Tile target 512 when VMEM allows.
    vmem_cap = _vmem_capacity_bytes()
    vmem_budget = int(min(int(vmem_cap * 0.82), 110 * 1024 * 1024))
    tile_target = 512 if vmem_cap >= 96 * 1024 * 1024 else 256

    cands_n = _tile_candidates(N, tile_target)
    cands_q = _tile_candidates(N, tile_target)
    TN = next((t for t in cands_n
               if _call1_vmem_bytes(t, C, sbw) <= vmem_budget), cands_n[-1])
    TQ = next((t for t in cands_q
               if _call2_vmem_bytes(t, N, C, hid, sbw) <= vmem_budget), cands_q[-1])
    assert N % TN == 0 and N % TQ == 0, "token tiles must divide N"

    # ---- call 1: LayerNorm1 + Q/K/V ----
    cost1 = pl.CostEstimate(
        flops=2 * B * N * C * 3 * C,
        transcendentals=B * N,
        bytes_accessed=4 * B * N * C + 3 * 2 * B * N * C + 3 * 2 * C * C,
    )
    q, k, v = pl.pallas_call(
        qkv_kernel,
        grid=(B, N // TN),
        out_shape=(
            jax.ShapeDtypeStruct((B, N, C), jnp.bfloat16),
            jax.ShapeDtypeStruct((B, N, C), jnp.bfloat16),
            jax.ShapeDtypeStruct((B, N, C), jnp.bfloat16),
        ),
        in_specs=[
            pl.BlockSpec((1, TN, C), lambda b, t: (b, t, 0)),
            _const_spec((1, C), sbw), _const_spec((1, C), sbw),
            _const_spec((C, C), sbw), _const_spec((1, C), sbw),
            _const_spec((C, C), sbw), _const_spec((1, C), sbw),
            _const_spec((C, C), sbw), _const_spec((1, C), sbw),
        ],
        out_specs=(
            pl.BlockSpec((1, TN, C), lambda b, t: (b, t, 0)),
            pl.BlockSpec((1, TN, C), lambda b, t: (b, t, 0)),
            pl.BlockSpec((1, TN, C), lambda b, t: (b, t, 0)),
        ),
        compiler_params=pltpu.CompilerParams(
            dimension_semantics=("parallel", "parallel"),
            vmem_limit_bytes=vmem_budget),
        cost_estimate=cost1,
    )(xf, g1, b1, wq, bq, wk, bk, wv, bv)

    # ---- call 2: attention + proj + residual + LayerNorm2 + MLP ----
    # B is the megacore-partitioned axis (query-tile axis is "arbitrary") so
    # the per-sample-resident K/V are not re-fetched per core.
    sem2 = ("parallel", "arbitrary") if B > 1 else ("parallel", "parallel")
    cost2 = pl.CostEstimate(
        flops=B * (4 * N * N * C + 2 * N * C * C + 4 * N * C * hid),
        transcendentals=B * (num_heads * N * N + N * hid),
        bytes_accessed=(4 * B * N * C + 3 * 2 * B * N * C
                        + 2 * (C * C + 2 * C * hid) + 4 * B * N * C),
    )
    out = pl.pallas_call(
        functools.partial(attn_mlp_kernel, num_heads=num_heads),
        grid=(B, N // TQ),
        out_shape=jax.ShapeDtypeStruct((B, N, C), x.dtype),
        in_specs=[
            pl.BlockSpec((1, TQ, C), lambda b, t: (b, t, 0)),   # shortcut x tile
            pl.BlockSpec((1, TQ, C), lambda b, t: (b, t, 0)),   # q tile (pre-scaled)
            pl.BlockSpec((1, N, C), lambda b, t: (b, 0, 0)),    # full-N K (per-sample)
            pl.BlockSpec((1, N, C), lambda b, t: (b, 0, 0)),    # full-N V (per-sample)
            _const_spec((C, C), sbw), _const_spec((1, C), sbw),
            _const_spec((1, C), sbw), _const_spec((1, C), sbw),
            _const_spec((C, hid), sbw), _const_spec((1, hid), sbw),
            _const_spec((hid, C), sbw), _const_spec((1, C), sbw),
        ],
        out_specs=pl.BlockSpec((1, TQ, C), lambda b, t: (b, t, 0)),
        scratch_shapes=[pltpu.VMEM((TQ, C), jnp.bfloat16)],
        compiler_params=pltpu.CompilerParams(
            dimension_semantics=sem2,
            vmem_limit_bytes=vmem_budget),
        cost_estimate=cost2,
    )(xf, q, k, v, wproj, bproj, g2, b2, w1, bm1, w2, bm2)

    return out.reshape(B, H, W, C)


def block_forward(x, params, num_heads):
    try:
        out = _block_forward_impl(x, params, num_heads, single_buffer_weights=True)
        return jax.block_until_ready(out)
    except Exception:
        # Fallback if pipeline_mode=pl.Buffered(1) is rejected by this JAX
        # build: identical kernels with default double-buffered weight specs.
        out = _block_forward_impl(x, params, num_heads, single_buffer_weights=False)
        return jax.block_until_ready(out)


# ---------------------------------------------------------------------------
# Pure-JAX reference mirroring the PyTorch Block forward (default config).
# ---------------------------------------------------------------------------
def block_reference(x, params, num_heads):
    B, H, W, C = x.shape
    N = H * W
    hd = C // num_heads
    scale = hd ** (-0.5)
    xf = x.reshape(B, N, C)

    def ln(t, g, b):
        mu = jnp.mean(t, axis=-1, keepdims=True)
        var = jnp.mean((t - mu) ** 2, axis=-1, keepdims=True)
        return (t - mu) / jnp.sqrt(var + LN_EPS) * g + b

    shortcut = xf
    xn = ln(xf, params["g1"], params["b1"])
    qkv = xn @ params["wqkv"] + params["bqkv"]        # (B, N, 3C)
    qkv = qkv.reshape(B, N, 3, num_heads, hd).transpose(2, 0, 3, 1, 4)
    q, k, v = qkv[0], qkv[1], qkv[2]                  # (B, nh, N, hd)
    attn = jnp.einsum("bhnd,bhmd->bhnm", q * scale, k)
    attn = jax.nn.softmax(attn, axis=-1)
    o = jnp.einsum("bhnm,bhmd->bhnd", attn, v)
    o = o.transpose(0, 2, 1, 3).reshape(B, N, C)
    o = o @ params["wproj"] + params["bproj"]
    x1 = shortcut + o
    xn2 = ln(x1, params["g2"], params["b2"])
    m = jax.nn.gelu(xn2 @ params["w1"] + params["bm1"], approximate=False)
    m = m @ params["w2"] + params["bm2"]
    return (x1 + m).reshape(B, H, W, C)


def make_params(key, dim, mlp_ratio, dtype=jnp.float32):
    hid = int(dim * mlp_ratio)
    ks = jax.random.split(key, 6)
    # Deterministic synthetic init (weights stored as (in, out); y = x @ W + b).
    return {
        "g1": jnp.ones((1, dim), dtype),
        "b1": jnp.zeros((1, dim), dtype),
        "wqkv": 0.02 * jax.random.normal(ks[0], (dim, 3 * dim), dtype),
        "bqkv": 0.01 * jax.random.normal(ks[1], (1, 3 * dim), dtype),
        "wproj": 0.02 * jax.random.normal(ks[2], (dim, dim), dtype),
        "bproj": 0.01 * jax.random.normal(ks[3], (1, dim), dtype),
        "g2": jnp.ones((1, dim), dtype),
        "b2": jnp.zeros((1, dim), dtype),
        "w1": 0.02 * jax.random.normal(ks[4], (dim, hid), dtype),
        "bm1": jnp.zeros((1, hid), dtype),
        "w2": 0.02 * jax.random.normal(ks[5], (hid, dim), dtype),
        "bm2": jnp.zeros((1, dim), dtype),
    }


if __name__ == "__main__":
    # Lane-dense small config: C=128, hid=512, N=64 tokens, 4 heads (hd=32).
    B, H, W, dim = 2, 8, 8, 128
    num_heads = 4
    mlp_ratio = 4.0

    key = jax.random.PRNGKey(0)
    kx, kp = jax.random.split(key)
    x = jax.random.normal(kx, (B, H, W, dim), jnp.float32)
    params = make_params(kp, dim, mlp_ratio)

    out = block_forward(x, params, num_heads)
    out = jax.block_until_ready(out)

    ref = block_reference(x, params, num_heads)
    # bf16 matmul operands + approx reciprocal + folded scale -> loosened
    # tolerance vs the f32 reference (accepted numerical deviation).
    np.testing.assert_allclose(np.asarray(out), np.asarray(ref),
                               rtol=2e-2, atol=2e-2)
    print("KERNEL_OK")
</pallas_src>

<mosaic_0001>
module attributes {stable_mosaic.version = 11 : i64} {
  func.func @qkv_kernel(%arg0: i32, %arg1: i32, %arg2: memref<1x64x128xf32, #tpu.memory_space<vmem>>, %arg3: memref<1x128xf32, #tpu.memory_space<vmem>>, %arg4: memref<1x128xf32, #tpu.memory_space<vmem>>, %arg5: memref<128x128xbf16, #tpu.memory_space<vmem>>, %arg6: memref<1x128xf32, #tpu.memory_space<vmem>>, %arg7: memref<128x128xbf16, #tpu.memory_space<vmem>>, %arg8: memref<1x128xf32, #tpu.memory_space<vmem>>, %arg9: memref<128x128xbf16, #tpu.memory_space<vmem>>, %arg10: memref<1x128xf32, #tpu.memory_space<vmem>>, %arg11: memref<1x64x128xbf16, #tpu.memory_space<vmem>>, %arg12: memref<1x64x128xbf16, #tpu.memory_space<vmem>>, %arg13: memref<1x64x128xbf16, #tpu.memory_space<vmem>>) attributes {dimension_semantics = [#tpu.dimension_semantics<parallel>, #tpu.dimension_semantics<parallel>], iteration_bounds = array<i64: 2, 1>, scalar_prefetch = 0 : i64, scratch_operands = 0 : i64, tpu.core_type = #tpu.core_type<tc>, window_params = [{transform_indices = @transform_0, window_bounds = array<i64: 1, 64, 128>}, {pipeline_mode = #tpu.pipeline_mode<synchronous>, transform_indices = @transform_1, window_bounds = array<i64: 1, 128>}, {pipeline_mode = #tpu.pipeline_mode<synchronous>, transform_indices = @transform_2, window_bounds = array<i64: 1, 128>}, {pipeline_mode = #tpu.pipeline_mode<synchronous>, transform_indices = @transform_3, window_bounds = array<i64: 128, 128>}, {pipeline_mode = #tpu.pipeline_mode<synchronous>, transform_indices = @transform_4, window_bounds = array<i64: 1, 128>}, {pipeline_mode = #tpu.pipeline_mode<synchronous>, transform_indices = @transform_5, window_bounds = array<i64: 128, 128>}, {pipeline_mode = #tpu.pipeline_mode<synchronous>, transform_indices = @transform_6, window_bounds = array<i64: 1, 128>}, {pipeline_mode = #tpu.pipeline_mode<synchronous>, transform_indices = @transform_7, window_bounds = array<i64: 128, 128>}, {pipeline_mode = #tpu.pipeline_mode<synchronous>, transform_indices = @transform_8, window_bounds = array<i64: 1, 128>}, {transform_indices = @transform_9, window_bounds = array<i64: 1, 64, 128>}, {transform_indices = @transform_10, window_bounds = array<i64: 1, 64, 128>}, {transform_indices = @transform_11, window_bounds = array<i64: 1, 64, 128>}]} {
    %c0 = arith.constant 0 : index
    %c0_0 = arith.constant 0 : index
    %c0_1 = arith.constant 0 : index
    %0 = vector.load %arg2[%c0, %c0_0, %c0_1] : memref<1x64x128xf32, #tpu.memory_space<vmem>>, vector<1x64x128xf32>
    %1 = vector.shape_cast %0 : vector<1x64x128xf32> to vector<64x128xf32>
    %c0_2 = arith.constant 0 : index
    %c0_3 = arith.constant 0 : index
    %2 = vector.load %arg3[%c0_2, %c0_3] : memref<1x128xf32, #tpu.memory_space<vmem>>, vector<1x128xf32>
    %c0_4 = arith.constant 0 : index
    %c0_5 = arith.constant 0 : index
    %3 = vector.load %arg4[%c0_4, %c0_5] : memref<1x128xf32, #tpu.memory_space<vmem>>, vector<1x128xf32>
    %cst = arith.constant dense<0.000000e+00> : vector<64xf32>
    %4 = vector.multi_reduction <add>, %1, %cst [1] : vector<64x128xf32> to vector<64xf32>
    %5 = vector.shape_cast %4 : vector<64xf32> to vector<64x1xf32>
    %cst_6 = arith.constant 1.280000e+02 : f32
    %6 = vector.broadcast %cst_6 : f32 to vector<64x1xf32>
    %7 = arith.divf %5, %6 : vector<64x1xf32>
    %8 = vector.broadcast %7 : vector<64x1xf32> to vector<64x128xf32>
    %9 = arith.subf %1, %8 : vector<64x128xf32>
    %10 = arith.mulf %9, %9 : vector<64x128xf32>
    %cst_7 = arith.constant dense<0.000000e+00> : vector<64xf32>
    %11 = vector.multi_reduction <add>, %10, %cst_7 [1] : vector<64x128xf32> to vector<64xf32>
    %12 = vector.shape_cast %11 : vector<64xf32> to vector<64x1xf32>
    %cst_8 = arith.constant 1.280000e+02 : f32
    %13 = vector.broadcast %cst_8 : f32 to vector<64x1xf32>
    %14 = arith.divf %12, %13 : vector<64x1xf32>
    %cst_9 = arith.constant 9.99999974E-6 : f32
    %15 = vector.broadcast %cst_9 : f32 to vector<64x1xf32>
    %16 = arith.addf %14, %15 : vector<64x1xf32>
    %17 = math.rsqrt %16 : vector<64x1xf32>
    %18 = vector.broadcast %17 : vector<64x1xf32> to vector<64x128xf32>
    %19 = arith.mulf %9, %18 : vector<64x128xf32>
    %20 = vector.broadcast %2 : vector<1x128xf32> to vector<64x128xf32>
    %21 = arith.mulf %19, %20 : vector<64x128xf32>
    %22 = vector.broadcast %3 : vector<1x128xf32> to vector<64x128xf32>
    %23 = arith.addf %21, %22 : vector<64x128xf32>
    %24 = arith.truncf %23 : vector<64x128xf32> to vector<64x128xbf16>
    %c0_10 = arith.constant 0 : index
    %c0_11 = arith.constant 0 : index
    %25 = vector.load %arg5[%c0_10, %c0_11] : memref<128x128xbf16, #tpu.memory_space<vmem>>, vector<128x128xbf16>
    %cst_12 = arith.constant dense<0.000000e+00> : vector<64x128xf32>
    %26 = tpu.matmul %24, %25, %cst_12 {dimension_numbers = #tpu.dot_dimension_numbers<[1], [0], [0], [1], [0, 0, 1, 1], [], []>} : vector<64x128xbf16>, vector<128x128xbf16>, vector<64x128xf32> -> vector<64x128xf32>
    %c0_13 = arith.constant 0 : index
    %c0_14 = arith.constant 0 : index
    %27 = vector.load %arg6[%c0_13, %c0_14] : memref<1x128xf32, #tpu.memory_space<vmem>>, vector<1x128xf32>
    %28 = vector.broadcast %27 : vector<1x128xf32> to vector<64x128xf32>
    %29 = arith.addf %26, %28 : vector<64x128xf32>
    %30 = arith.truncf %29 : vector<64x128xf32> to vector<64x128xbf16>
    %c0_15 = arith.constant 0 : index
    %c0_16 = arith.constant 0 : index
    %c0_17 = arith.constant 0 : index
    %31 = vector.load %arg11[%c0_15, %c0_16, %c0_17] : memref<1x64x128xbf16, #tpu.memory_space<vmem>>, vector<1x64x128xbf16>
    %32 = vector.shape_cast %31 : vector<1x64x128xbf16> to vector<64x128xbf16>
    %33 = vector.shape_cast %30 : vector<64x128xbf16> to vector<1x64x128xbf16>
    tpu.vector_store %arg11[%c0_15, %c0_16, %c0_17], %33 {strides = array<i32>} : memref<1x64x128xbf16, #tpu.memory_space<vmem>>, vector<1x64x128xbf16>,
    %c0_18 = arith.constant 0 : index
    %c0_19 = arith.constant 0 : index
    %34 = vector.load %arg7[%c0_18, %c0_19] : memref<128x128xbf16, #tpu.memory_space<vmem>>, vector<128x128xbf16>
    %cst_20 = arith.constant dense<0.000000e+00> : vector<64x128xf32>
    %35 = tpu.matmul %24, %34, %cst_20 {dimension_numbers = #tpu.dot_dimension_numbers<[1], [0], [0], [1], [0, 0, 1, 1], [], []>} : vector<64x128xbf16>, vector<128x128xbf16>, vector<64x128xf32> -> vector<64x128xf32>
    %c0_21 = arith.constant 0 : index
    %c0_22 = arith.constant 0 : index
    %36 = vector.load %arg8[%c0_21, %c0_22] : memref<1x128xf32, #tpu.memory_space<vmem>>, vector<1x128xf32>
    %37 = vector.broadcast %36 : vector<1x128xf32> to vector<64x128xf32>
    %38 = arith.addf %35, %37 : vector<64x128xf32>
    %39 = arith.truncf %38 : vector<64x128xf32> to vector<64x128xbf16>
    %c0_23 = arith.constant 0 : index
    %c0_24 = arith.constant 0 : index
    %c0_25 = arith.constant 0 : index
    %40 = vector.load %arg12[%c0_23, %c0_24, %c0_25] : memref<1x64x128xbf16, #tpu.memory_space<vmem>>, vector<1x64x128xbf16>
    %41 = vector.shape_cast %40 : vector<1x64x128xbf16> to vector<64x128xbf16>
    %42 = vector.shape_cast %39 : vector<64x128xbf16> to vector<1x64x128xbf16>
    tpu.vector_store %arg12[%c0_23, %c0_24, %c0_25], %42 {strides = array<i32>} : memref<1x64x128xbf16, #tpu.memory_space<vmem>>, vector<1x64x128xbf16>,
    %c0_26 = arith.constant 0 : index
    %c0_27 = arith.constant 0 : index
    %43 = vector.load %arg9[%c0_26, %c0_27] : memref<128x128xbf16, #tpu.memory_space<vmem>>, vector<128x128xbf16>
    %cst_28 = arith.constant dense<0.000000e+00> : vector<64x128xf32>
    %44 = tpu.matmul %24, %43, %cst_28 {dimension_numbers = #tpu.dot_dimension_numbers<[1], [0], [0], [1], [0, 0, 1, 1], [], []>} : vector<64x128xbf16>, vector<128x128xbf16>, vector<64x128xf32> -> vector<64x128xf32>
    %c0_29 = arith.constant 0 : index
    %c0_30 = arith.constant 0 : index
    %45 = vector.load %arg10[%c0_29, %c0_30] : memref<1x128xf32, #tpu.memory_space<vmem>>, vector<1x128xf32>
    %46 = vector.broadcast %45 : vector<1x128xf32> to vector<64x128xf32>
    %47 = arith.addf %44, %46 : vector<64x128xf32>
    %48 = arith.truncf %47 : vector<64x128xf32> to vector<64x128xbf16>
    %c0_31 = arith.constant 0 : index
    %c0_32 = arith.constant 0 : index
    %c0_33 = arith.constant 0 : index
    %49 = vector.load %arg13[%c0_31, %c0_32, %c0_33] : memref<1x64x128xbf16, #tpu.memory_space<vmem>>, vector<1x64x128xbf16>
    %50 = vector.shape_cast %49 : vector<1x64x128xbf16> to vector<64x128xbf16>
    %51 = vector.shape_cast %48 : vector<64x128xbf16> to vector<1x64x128xbf16>
    tpu.vector_store %arg13[%c0_31, %c0_32, %c0_33], %51 {strides = array<i32>} : memref<1x64x128xbf16, #tpu.memory_space<vmem>>, vector<1x64x128xbf16>,
    return
  }
  func.func @transform_0(%arg0: i32, %arg1: i32) -> (i32, i32, i32) {
    %c0_i32 = arith.constant 0 : i32
    %c0_i32_0 = arith.constant 0 : i32
    return %arg0, %arg1, %c0_i32 : i32, i32, i32
  }
  func.func @transform_1(%arg0: i32, %arg1: i32) -> (i32, i32) {
    %c0_i32 = arith.constant 0 : i32
    %c0_i32_0 = arith.constant 0 : i32
    %c0_i32_1 = arith.constant 0 : i32
    return %c0_i32, %c0_i32_0 : i32, i32
  }
  func.func @transform_2(%arg0: i32, %arg1: i32) -> (i32, i32) {
    %c0_i32 = arith.constant 0 : i32
    %c0_i32_0 = arith.constant 0 : i32
    %c0_i32_1 = arith.constant 0 : i32
    return %c0_i32, %c0_i32_0 : i32, i32
  }
  func.func @transform_3(%arg0: i32, %arg1: i32) -> (i32, i32) {
    %c0_i32 = arith.constant 0 : i32
    %c0_i32_0 = arith.constant 0 : i32
    %c0_i32_1 = arith.constant 0 : i32
    return %c0_i32, %c0_i32_0 : i32, i32
  }
  func.func @transform_4(%arg0: i32, %arg1: i32) -> (i32, i32) {
    %c0_i32 = arith.constant 0 : i32
    %c0_i32_0 = arith.constant 0 : i32
    %c0_i32_1 = arith.constant 0 : i32
    return %c0_i32, %c0_i32_0 : i32, i32
  }
  func.func @transform_5(%arg0: i32, %arg1: i32) -> (i32, i32) {
    %c0_i32 = arith.constant 0 : i32
    %c0_i32_0 = arith.constant 0 : i32
    %c0_i32_1 = arith.constant 0 : i32
    return %c0_i32, %c0_i32_0 : i32, i32
  }
  func.func @transform_6(%arg0: i32, %arg1: i32) -> (i32, i32) {
    %c0_i32 = arith.constant 0 : i32
    %c0_i32_0 = arith.constant 0 : i32
    %c0_i32_1 = arith.constant 0 : i32
    return %c0_i32, %c0_i32_0 : i32, i32
  }
  func.func @transform_7(%arg0: i32, %arg1: i32) -> (i32, i32) {
    %c0_i32 = arith.constant 0 : i32
    %c0_i32_0 = arith.constant 0 : i32
    %c0_i32_1 = arith.constant 0 : i32
    return %c0_i32, %c0_i32_0 : i32, i32
  }
  func.func @transform_8(%arg0: i32, %arg1: i32) -> (i32, i32) {
    %c0_i32 = arith.constant 0 : i32
    %c0_i32_0 = arith.constant 0 : i32
    %c0_i32_1 = arith.constant 0 : i32
    return %c0_i32, %c0_i32_0 : i32, i32
  }
  func.func @transform_9(%arg0: i32, %arg1: i32) -> (i32, i32, i32) {
    %c0_i32 = arith.constant 0 : i32
    %c0_i32_0 = arith.constant 0 : i32
    return %arg0, %arg1, %c0_i32 : i32, i32, i32
  }
  func.func @transform_10(%arg0: i32, %arg1: i32) -> (i32, i32, i32) {
    %c0_i32 = arith.constant 0 : i32
    %c0_i32_0 = arith.constant 0 : i32
    return %arg0, %arg1, %c0_i32 : i32, i32, i32
  }
  func.func @transform_11(%arg0: i32, %arg1: i32) -> (i32, i32, i32) {
    %c0_i32 = arith.constant 0 : i32
    %c0_i32_0 = arith.constant 0 : i32
    return %arg0, %arg1, %c0_i32 : i32, i32, i32
  }
}

module attributes {stable_mosaic.version = 11 : i64} {
  func.func @qkv_kernel(%arg0: i32, %arg1: i32, %arg2: memref<1x64x128xf32, #tpu.memory_space<vmem>>, %arg3: memref<1x128xf32, #tpu.memory_space<vmem>>, %arg4: memref<1x128xf32, #tpu.memory_space<vmem>>, %arg5: memref<128x128xbf16, #tpu.memory_space<vmem>>, %arg6: memref<1x128xf32, #tpu.memory_space<vmem>>, %arg7: memref<128x128xbf16, #tpu.memory_space<vmem>>, %arg8: memref<1x128xf32, #tpu.memory_space<vmem>>, %arg9: memref<128x128xbf16, #tpu.memory_space<vmem>>, %arg10: memref<1x128xf32, #tpu.memory_space<vmem>>, %arg11: memref<1x64x128xbf16, #tpu.memory_space<vmem>>, %arg12: memref<1x64x128xbf16, #tpu.memory_space<vmem>>, %arg13: memref<1x64x128xbf16, #tpu.memory_space<vmem>>) attributes {dimension_semantics = [#tpu.dimension_semantics<parallel>, #tpu.dimension_semantics<parallel>], iteration_bounds = array<i64: 2, 1>, scalar_prefetch = 0 : i64, scratch_operands = 0 : i64, tpu.core_type = #tpu.core_type<tc>, window_params = [{transform_indices = @transform_0, window_bounds = array<i64: 1, 64, 128>}, {pipeline_mode = #tpu.pipeline_mode<synchronous>, transform_indices = @transform_1, window_bounds = array<i64: 1, 128>}, {pipeline_mode = #tpu.pipeline_mode<synchronous>, transform_indices = @transform_2, window_bounds = array<i64: 1, 128>}, {pipeline_mode = #tpu.pipeline_mode<synchronous>, transform_indices = @transform_3, window_bounds = array<i64: 128, 128>}, {pipeline_mode = #tpu.pipeline_mode<synchronous>, transform_indices = @transform_4, window_bounds = array<i64: 1, 128>}, {pipeline_mode = #tpu.pipeline_mode<synchronous>, transform_indices = @transform_5, window_bounds = array<i64: 128, 128>}, {pipeline_mode = #tpu.pipeline_mode<synchronous>, transform_indices = @transform_6, window_bounds = array<i64: 1, 128>}, {pipeline_mode = #tpu.pipeline_mode<synchronous>, transform_indices = @transform_7, window_bounds = array<i64: 128, 128>}, {pipeline_mode = #tpu.pipeline_mode<synchronous>, transform_indices = @transform_8, window_bounds = array<i64: 1, 128>}, {transform_indices = @transform_9, window_bounds = array<i64: 1, 64, 128>}, {transform_indices = @transform_10, window_bounds = array<i64: 1, 64, 128>}, {transform_indices = @transform_11, window_bounds = array<i64: 1, 64, 128>}]} {
    %c0 = arith.constant 0 : index
    %c0_0 = arith.constant 0 : index
    %c0_1 = arith.constant 0 : index
    %0 = vector.load %arg2[%c0, %c0_0, %c0_1] : memref<1x64x128xf32, #tpu.memory_space<vmem>>, vector<1x64x128xf32>
    %1 = vector.shape_cast %0 : vector<1x64x128xf32> to vector<64x128xf32>
    %c0_2 = arith.constant 0 : index
    %c0_3 = arith.constant 0 : index
    %2 = vector.load %arg3[%c0_2, %c0_3] : memref<1x128xf32, #tpu.memory_space<vmem>>, vector<1x128xf32>
    %c0_4 = arith.constant 0 : index
    %c0_5 = arith.constant 0 : index
    %3 = vector.load %arg4[%c0_4, %c0_5] : memref<1x128xf32, #tpu.memory_space<vmem>>, vector<1x128xf32>
    %cst = arith.constant dense<0.000000e+00> : vector<64xf32>
    %4 = vector.multi_reduction <add>, %1, %cst [1] : vector<64x128xf32> to vector<64xf32>
    %5 = vector.shape_cast %4 : vector<64xf32> to vector<64x1xf32>
    %cst_6 = arith.constant 1.280000e+02 : f32
    %6 = vector.broadcast %cst_6 : f32 to vector<64x1xf32>
    %7 = arith.divf %5, %6 : vector<64x1xf32>
    %8 = vector.broadcast %7 : vector<64x1xf32> to vector<64x128xf32>
    %9 = arith.subf %1, %8 : vector<64x128xf32>
    %10 = arith.mulf %9, %9 : vector<64x128xf32>
    %cst_7 = arith.constant dense<0.000000e+00> : vector<64xf32>
    %11 = vector.multi_reduction <add>, %10, %cst_7 [1] : vector<64x128xf32> to vector<64xf32>
    %12 = vector.shape_cast %11 : vector<64xf32> to vector<64x1xf32>
    %cst_8 = arith.constant 1.280000e+02 : f32
    %13 = vector.broadcast %cst_8 : f32 to vector<64x1xf32>
    %14 = arith.divf %12, %13 : vector<64x1xf32>
    %cst_9 = arith.constant 9.99999974E-6 : f32
    %15 = vector.broadcast %cst_9 : f32 to vector<64x1xf32>
    %16 = arith.addf %14, %15 : vector<64x1xf32>
    %17 = math.rsqrt %16 : vector<64x1xf32>
    %18 = vector.broadcast %17 : vector<64x1xf32> to vector<64x128xf32>
    %19 = arith.mulf %9, %18 : vector<64x128xf32>
    %20 = vector.broadcast %2 : vector<1x128xf32> to vector<64x128xf32>
    %21 = arith.mulf %19, %20 : vector<64x128xf32>
    %22 = vector.broadcast %3 : vector<1x128xf32> to vector<64x128xf32>
    %23 = arith.addf %21, %22 : vector<64x128xf32>
    %24 = arith.truncf %23 : vector<64x128xf32> to vector<64x128xbf16>
    %c0_10 = arith.constant 0 : index
    %c0_11 = arith.constant 0 : index
    %25 = vector.load %arg5[%c0_10, %c0_11] : memref<128x128xbf16, #tpu.memory_space<vmem>>, vector<128x128xbf16>
    %cst_12 = arith.constant dense<0.000000e+00> : vector<64x128xf32>
    %26 = tpu.matmul %24, %25, %cst_12 {dimension_numbers = #tpu.dot_dimension_numbers<[1], [0], [0], [1], [0, 0, 1, 1], [], []>} : vector<64x128xbf16>, vector<128x128xbf16>, vector<64x128xf32> -> vector<64x128xf32>
    %c0_13 = arith.constant 0 : index
    %c0_14 = arith.constant 0 : index
    %27 = vector.load %arg6[%c0_13, %c0_14] : memref<1x128xf32, #tpu.memory_space<vmem>>, vector<1x128xf32>
    %28 = vector.broadcast %27 : vector<1x128xf32> to vector<64x128xf32>
    %29 = arith.addf %26, %28 : vector<64x128xf32>
    %30 = arith.truncf %29 : vector<64x128xf32> to vector<64x128xbf16>
    %c0_15 = arith.constant 0 : index
    %c0_16 = arith.constant 0 : index
    %c0_17 = arith.constant 0 : index
    %31 = vector.load %arg11[%c0_15, %c0_16, %c0_17] : memref<1x64x128xbf16, #tpu.memory_space<vmem>>, vector<1x64x128xbf16>
    %32 = vector.shape_cast %31 : vector<1x64x128xbf16> to vector<64x128xbf16>
    %33 = vector.shape_cast %30 : vector<64x128xbf16> to vector<1x64x128xbf16>
    tpu.vector_store %arg11[%c0_15, %c0_16, %c0_17], %33 {strides = array<i32>} : memref<1x64x128xbf16, #tpu.memory_space<vmem>>, vector<1x64x128xbf16>,
    %c0_18 = arith.constant 0 : index
    %c0_19 = arith.constant 0 : index
    %34 = vector.load %arg7[%c0_18, %c0_19] : memref<128x128xbf16, #tpu.memory_space<vmem>>, vector<128x128xbf16>
    %cst_20 = arith.constant dense<0.000000e+00> : vector<64x128xf32>
    %35 = tpu.matmul %24, %34, %cst_20 {dimension_numbers = #tpu.dot_dimension_numbers<[1], [0], [0], [1], [0, 0, 1, 1], [], []>} : vector<64x128xbf16>, vector<128x128xbf16>, vector<64x128xf32> -> vector<64x128xf32>
    %c0_21 = arith.constant 0 : index
    %c0_22 = arith.constant 0 : index
    %36 = vector.load %arg8[%c0_21, %c0_22] : memref<1x128xf32, #tpu.memory_space<vmem>>, vector<1x128xf32>
    %37 = vector.broadcast %36 : vector<1x128xf32> to vector<64x128xf32>
    %38 = arith.addf %35, %37 : vector<64x128xf32>
    %39 = arith.truncf %38 : vector<64x128xf32> to vector<64x128xbf16>
    %c0_23 = arith.constant 0 : index
    %c0_24 = arith.constant 0 : index
    %c0_25 = arith.constant 0 : index
    %40 = vector.load %arg12[%c0_23, %c0_24, %c0_25] : memref<1x64x128xbf16, #tpu.memory_space<vmem>>, vector<1x64x128xbf16>
    %41 = vector.shape_cast %40 : vector<1x64x128xbf16> to vector<64x128xbf16>
    %42 = vector.shape_cast %39 : vector<64x128xbf16> to vector<1x64x128xbf16>
    tpu.vector_store %arg12[%c0_23, %c0_24, %c0_25], %42 {strides = array<i32>} : memref<1x64x128xbf16, #tpu.memory_space<vmem>>, vector<1x64x128xbf16>,
    %c0_26 = arith.constant 0 : index
    %c0_27 = arith.constant 0 : index
    %43 = vector.load %arg9[%c0_26, %c0_27] : memref<128x128xbf16, #tpu.memory_space<vmem>>, vector<128x128xbf16>
    %cst_28 = arith.constant dense<0.000000e+00> : vector<64x128xf32>
    %44 = tpu.matmul %24, %43, %cst_28 {dimension_numbers = #tpu.dot_dimension_numbers<[1], [0], [0], [1], [0, 0, 1, 1], [], []>} : vector<64x128xbf16>, vector<128x128xbf16>, vector<64x128xf32> -> vector<64x128xf32>
    %c0_29 = arith.constant 0 : index
    %c0_30 = arith.constant 0 : index
    %45 = vector.load %arg10[%c0_29, %c0_30] : memref<1x128xf32, #tpu.memory_space<vmem>>, vector<1x128xf32>
    %46 = vector.broadcast %45 : vector<1x128xf32> to vector<64x128xf32>
    %47 = arith.addf %44, %46 : vector<64x128xf32>
    %48 = arith.truncf %47 : vector<64x128xf32> to vector<64x128xbf16>
    %c0_31 = arith.constant 0 : index
    %c0_32 = arith.constant 0 : index
    %c0_33 = arith.constant 0 : index
    %49 = vector.load %arg13[%c0_31, %c0_32, %c0_33] : memref<1x64x128xbf16, #tpu.memory_space<vmem>>, vector<1x64x128xbf16>
    %50 = vector.shape_cast %49 : vector<1x64x128xbf16> to vector<64x128xbf16>
    %51 = vector.shape_cast %48 : vector<64x128xbf16> to vector<1x64x128xbf16>
    tpu.vector_store %arg13[%c0_31, %c0_32, %c0_33], %51 {strides = array<i32>} : memref<1x64x128xbf16, #tpu.memory_space<vmem>>, vector<1x64x128xbf16>,
    return
  }
  func.func @transform_0(%arg0: i32, %arg1: i32) -> (i32, i32, i32) {
    %c0_i32 = arith.constant 0 : i32
    %c0_i32_0 = arith.constant 0 : i32
    return %arg0, %arg1, %c0_i32 : i32, i32, i32
  }
  func.func @transform_1(%arg0: i32, %arg1: i32) -> (i32, i32) {
    %c0_i32 = arith.constant 0 : i32
    %c0_i32_0 = arith.constant 0 : i32
    %c0_i32_1 = arith.constant 0 : i32
    return %c0_i32, %c0_i32_0 : i32, i32
  }
  func.func @transform_2(%arg0: i32, %arg1: i32) -> (i32, i32) {
    %c0_i32 = arith.constant 0 : i32
    %c0_i32_0 = arith.constant 0 : i32
    %c0_i32_1 = arith.constant 0 : i32
    return %c0_i32, %c0_i32_0 : i32, i32
  }
  func.func @transform_3(%arg0: i32, %arg1: i32) -> (i32, i32) {
    %c0_i32 = arith.constant 0 : i32
    %c0_i32_0 = arith.constant 0 : i32
    %c0_i32_1 = arith.constant 0 : i32
    return %c0_i32, %c0_i32_0 : i32, i32
  }
  func.func @transform_4(%arg0: i32, %arg1: i32) -> (i32, i32) {
    %c0_i32 = arith.constant 0 : i32
    %c0_i32_0 = arith.constant 0 : i32
    %c0_i32_1 = arith.constant 0 : i32
    return %c0_i32, %c0_i32_0 : i32, i32
  }
  func.func @transform_5(%arg0: i32, %arg1: i32) -> (i32, i32) {
    %c0_i32 = arith.constant 0 : i32
    %c0_i32_0 = arith.constant 0 : i32
    %c0_i32_1 = arith.constant 0 : i32
    return %c0_i32, %c0_i32_0 : i32, i32
  }
  func.func @transform_6(%arg0: i32, %arg1: i32) -> (i32, i32) {
    %c0_i32 = arith.constant 0 : i32
    %c0_i32_0 = arith.constant 0 : i32
    %c0_i32_1 = arith.constant 0 : i32
    return %c0_i32, %c0_i32_0 : i32, i32
  }
  func.func @transform_7(%arg0: i32, %arg1: i32) -> (i32, i32) {
    %c0_i32 = arith.constant 0 : i32
    %c0_i32_0 = arith.constant 0 : i32
    %c0_i32_1 = arith.constant 0 : i32
    return %c0_i32, %c0_i32_0 : i32, i32
  }
  func.func @transform_8(%arg0: i32, %arg1: i32) -> (i32, i32) {
    %c0_i32 = arith.constant 0 : i32
    %c0_i32_0 = arith.constant 0 : i32
    %c0_i32_1 = arith.constant 0 : i32
    return %c0_i32, %c0_i32_0 : i32, i32
  }
  func.func @transform_9(%arg0: i32, %arg1: i32) -> (i32, i32, i32) {
    %c0_i32 = arith.constant 0 : i32
    %c0_i32_0 = arith.constant 0 : i32
    return %arg0, %arg1, %c0_i32 : i32, i32, i32
  }
  func.func @transform_10(%arg0: i32, %arg1: i32) -> (i32, i32, i32) {
    %c0_i32 = arith.constant 0 : i32
    %c0_i32_0 = arith.constant 0 : i32
    return %arg0, %arg1, %c0_i32 : i32, i32, i32
  }
  func.func @transform_11(%arg0: i32, %arg1: i32) -> (i32, i32, i32) {
    %c0_i32 = arith.constant 0 : i32
    %c0_i32_0 = arith.constant 0 : i32
    return %arg0, %arg1, %c0_i32 : i32, i32, i32
  }
}

</mosaic_0001>

<llo_original>
// kernel: tpu_custom_call.1
$region0: #{tpu_custom_call.1}
  #allocation0 [shape = 'u32[]', space=smem, size = 0x4, offset = 0x4, fixed_abs, tag = 'smem constant byte address 0x4 - core index']
  #allocation1 [shape = 'u32[144,128]{1,0:T(1,128)}', space=vmem, size = 0x12000, scoped, tag = 'internal scratch']
  %s0 = inlined_call_operand.hbm [shape: f32[2,64,128], index: 0, kind: input, shape index: {}]
  %s1 = inlined_call_operand.vmem [shape: f32[1,128], index: 1, kind: input, shape index: {}]
  %s2 = inlined_call_operand.vmem [shape: f32[1,128], index: 2, kind: input, shape index: {}]
  %s3 = inlined_call_operand.hbm [shape: bf16[128,128], index: 3, kind: input, shape index: {}]
  %s4 = inlined_call_operand.vmem [shape: f32[1,128], index: 4, kind: input, shape index: {}]
  %s5 = inlined_call_operand.hbm [shape: bf16[128,128], index: 5, kind: input, shape index: {}]
  %s6 = inlined_call_operand.vmem [shape: f32[1,128], index: 6, kind: input, shape index: {}]
  %s7 = inlined_call_operand.hbm [shape: bf16[128,128], index: 7, kind: input, shape index: {}]
  %s8 = inlined_call_operand.vmem [shape: f32[1,128], index: 8, kind: input, shape index: {}]
  %s9 = inlined_call_operand.hbm [shape: bf16[2,64,128], index: 9, kind: output, shape index: {0}]
  %s10 = inlined_call_operand.hbm [shape: bf16[2,64,128], index: 10, kind: output, shape index: {1}]
  %s11 = inlined_call_operand.hbm [shape: bf16[2,64,128], index: 11, kind: output, shape index: {2}]
  %12 = xla_tuple %s9, %s10, %s11
  %s13 = sld [smem:[#allocation0]]
  $region101: #{tpu_custom_call.1} parent=0
    _
  %s15 = ssub.s32 1, %s13
  %s16 = scalar_select 0, %s15, %s13
  $region1: #{tpu_custom_call.1} parent=0
    #allocation2 [shape = 'u8[65536]{0}', space=vmem, size = 0x10000, scoped, tag = 'input window, operand 0']
    #allocation3 [shape = 's32[2]{0}', space=sflag, size = 0x8, scoped, tag = 'scoped memory for tpu_custom_call.1']
    #allocation4 [shape = 's32[2]{0}', space=sflag, size = 0x8, scoped, tag = 'scoped memory for tpu_custom_call.1']
    #allocation5 [shape = 'u8[32768]{0}', space=vmem, size = 0x8000, scoped, tag = 'input window, operand 3, single buffered']
    #allocation6 [shape = 's32[1]{0}', space=sflag, size = 0x4, scoped, tag = 'scoped memory for tpu_custom_call.1']
    #allocation7 [shape = 'u8[32768]{0}', space=vmem, size = 0x8000, scoped, tag = 'input window, operand 5, single buffered']
    #allocation8 [shape = 'u8[32768]{0}', space=vmem, size = 0x8000, scoped, tag = 'input window, operand 7, single buffered']
    #allocation9 [shape = 's32[1]{0}', space=sflag, size = 0x4, scoped, tag = 'scoped memory for tpu_custom_call.1']
    #allocation10 [shape = 'u8[32768]{0}', space=vmem, size = 0x8000, scoped, tag = 'output window, operand 0']
    #allocation11 [shape = 'u8[32768]{0}', space=vmem, size = 0x8000, scoped, tag = 'output window, operand 1']
    #allocation12 [shape = 's32[2]{0}', space=sflag, size = 0x8, scoped, tag = 'scoped memory for tpu_custom_call.1']
    #allocation13 [shape = 'u8[32768]{0}', space=vmem, size = 0x8000, scoped, tag = 'output window, operand 2']
    %17 = vsyncpa [#allocation3], 0
    %s18 = scalar_lea.sflag [#allocation3], 1
    %19 = vsyncpa %s18, 0
    %20 = vsyncpa [#allocation6], 0
    %21 = vsyncpa [#allocation9], 0
    %22 = vsyncpa [#allocation4], 0
    %s23 = scalar_lea.sflag [#allocation4], 1
    %24 = vsyncpa %s23, 0
    %25 = vsyncpa [#allocation12], 0
    %s26 = scalar_lea.sflag [#allocation12], 1
    %27 = vsyncpa %s26, 0
    loop: start=0, step=1, limit=4
    $region2: #{tpu_custom_call.1} parent=1 // loop_pre_header
      _
    $region3: #{tpu_custom_call.1} parent=1 // loop_header
      %s29 = sphi 0, %s33
      %p30 = scmp.ge.s32.totalorder %s29, 4
      %s36 = sphi 0, %s48
      %s37 = sphi 0, %s44
      %s38 = sphi 0, %s36
      %s39 = sphi 0, %s37
      %s40 = sphi 0, %s38
      %s41 = sphi 0, %s39
      %s53 = sphi 0, %s55
      %s56 = sphi 0, %s53
      %s57 = sphi 0, %s56
      %s73 = sphi 0, %s57
      %s77 = sphi 0, %s77
      %s79 = sphi 0, %s77
      %s80 = sphi 0, %s79
      %s94 = sphi 0, %s80
      %s98 = sphi 0, %s98
      %s100 = sphi 0, %s98
      %s101 = sphi 0, %s100
      %s115 = sphi 0, %s101
      %s119 = sphi 0, %s119
      %s121 = sphi 0, %s119
      %s122 = sphi 0, %s121
      %s136 = sphi 0, %s122
      %s140 = sphi 0, %s140
      %s142 = sphi 0, %s140
      %s143 = sphi 0, %s142
      %s157 = sphi 0, %s143
      %s161 = sphi 0, %s161
      %s163 = sphi 0, %s161
      %s164 = sphi 0, %s163
      %s178 = sphi 0, %s164
      %s182 = sphi 0, %s182
      %s184 = sphi 0, %s182
      %s185 = sphi 0, %s184
      %s199 = sphi 0, %s185
      %s203 = sphi 0, %s203
      %s205 = sphi 0, %s203
      %s206 = sphi 0, %s205
      %s220 = sphi 0, %s206
      %s224 = sphi 0, %s224
      %s226 = sphi 0, %s224
      %s227 = sphi 0, %s226
      %s241 = sphi 0, %s227
      %s249 = sphi 0, %s251
      %s252 = sphi 0, %s249
      %s253 = sphi 0, %s252
      %s269 = sphi 0, %s253
      %s277 = sphi 0, %s279
      %s280 = sphi 0, %s277
      %s281 = sphi 0, %s280
      %s297 = sphi 0, %s281
      %s305 = sphi 0, %s307
      %s308 = sphi 0, %s305
      %s309 = sphi 0, %s308
      %s325 = sphi 0, %s309
    $region4: #{tpu_custom_call.1} parent=1 // loop_header_branch
      %32 = sbr.rel (%p30) target = $region8
    $region5: #{tpu_custom_call.1} parent=1 // loop_body
      %s34 = ssub.s32 %s29, 1
      %s35 = ssub.s32 %s29, 2
      %s42 = sadd.s32 1, %s37
      %p43 = scmp.ge.s32.totalorder %s42, 1
      %s44 = scalar_select %p43, 0, %s42
      %s45 = sadd.s32 1, %s36
      %s46 = scalar_select %p43, %s45, %s36
      %p47 = scmp.ge.s32.totalorder %s46, 2
      %s48 = scalar_select %p47, 0, %s46
      %s49 = ssub.s32 %s36, %s48
      %s50 = ssub.s32 %s37, %s44
      %s51 = sor.u32 %s49, %s50
      %p52 = scmp.eq.s32.totalorder %s51, 0
      %s54 = sadd.s32 %s53, 1
      %s55 = scalar_select %p52, %s53, %s54
      %p58 = pneg %p52
      %p59 = scmp.eq.s32.totalorder %s29, 1
      %p60 = por %p58, %p59
      %p61 = scmp.ne.s32.totalorder %s53, %s56
      %p62 = scmp.eq.s32.totalorder %s29, 0
      %p63 = por %p61, %p62
      %p64 = scmp.ne.s32.totalorder %s53, %s56
      %p65 = scmp.eq.s32.totalorder %s34, 1
      %p66 = por %p64, %p65
      %p67 = scmp.ne.s32.totalorder %s56, %s57
      %p68 = scmp.eq.s32.totalorder %s34, 0
      %p69 = por %p67, %p68
      %p70 = scmp.ne.s32.totalorder %s56, %s57
      %p71 = scmp.eq.s32.totalorder %s35, 1
      %p72 = por %p70, %p71
      %p74 = scmp.ne.s32.totalorder %s57, %s73
      %p75 = scmp.eq.s32.totalorder %s35, 0
      %p76 = por %p74, %p75
      %s78 = sadd.s32 %s77, 1
      %p81 = scmp.eq.s32.totalorder %s29, 1
      %p82 = scmp.ne.s32.totalorder %s77, %s79
      %p83 = scmp.eq.s32.totalorder %s29, 0
      %p84 = por %p82, %p83
      %p85 = scmp.ne.s32.totalorder %s77, %s79
      %p86 = scmp.eq.s32.totalorder %s34, 1
      %p87 = por %p85, %p86
      %p88 = scmp.ne.s32.totalorder %s79, %s80
      %p89 = scmp.eq.s32.totalorder %s34, 0
      %p90 = por %p88, %p89
      %p91 = scmp.ne.s32.totalorder %s79, %s80
      %p92 = scmp.eq.s32.totalorder %s35, 1
      %p93 = por %p91, %p92
      %p95 = scmp.ne.s32.totalorder %s80, %s94
      %p96 = scmp.eq.s32.totalorder %s35, 0
      %p97 = por %p95, %p96
      %s99 = sadd.s32 %s98, 1
      %p102 = scmp.eq.s32.totalorder %s29, 1
      %p103 = scmp.ne.s32.totalorder %s98, %s100
      %p104 = scmp.eq.s32.totalorder %s29, 0
      %p105 = por %p103, %p104
      %p106 = scmp.ne.s32.totalorder %s98, %s100
      %p107 = scmp.eq.s32.totalorder %s34, 1
      %p108 = por %p106, %p107
      %p109 = scmp.ne.s32.totalorder %s100, %s101
      %p110 = scmp.eq.s32.totalorder %s34, 0
      %p111 = por %p109, %p110
      %p112 = scmp.ne.s32.totalorder %s100, %s101
      %p113 = scmp.eq.s32.totalorder %s35, 1
      %p114 = por %p112, %p113
      %p116 = scmp.ne.s32.totalorder %s101, %s115
      %p117 = scmp.eq.s32.totalorder %s35, 0
      %p118 = por %p116, %p117
      %s120 = sadd.s32 %s119, 1
      %p123 = scmp.eq.s32.totalorder %s29, 1
      %p124 = scmp.ne.s32.totalorder %s119, %s121
      %p125 = scmp.eq.s32.totalorder %s29, 0
      %p126 = por %p124, %p125
      %p127 = scmp.ne.s32.totalorder %s119, %s121
      %p128 = scmp.eq.s32.totalorder %s34, 1
      %p129 = por %p127, %p128
      %p130 = scmp.ne.s32.totalorder %s121, %s122
      %p131 = scmp.eq.s32.totalorder %s34, 0
      %p132 = por %p130, %p131
      %p133 = scmp.ne.s32.totalorder %s121, %s122
      %p134 = scmp.eq.s32.totalorder %s35, 1
      %p135 = por %p133, %p134
      %p137 = scmp.ne.s32.totalorder %s122, %s136
      %p138 = scmp.eq.s32.totalorder %s35, 0
      %p139 = por %p137, %p138
      %s141 = sadd.s32 %s140, 1
      %p144 = scmp.eq.s32.totalorder %s29, 1
      %p145 = scmp.ne.s32.totalorder %s140, %s142
      %p146 = scmp.eq.s32.totalorder %s29, 0
      %p147 = por %p145, %p146
      %p148 = scmp.ne.s32.totalorder %s140, %s142
      %p149 = scmp.eq.s32.totalorder %s34, 1
      %p150 = por %p148, %p149
      %p151 = scmp.ne.s32.totalorder %s142, %s143
      %p152 = scmp.eq.s32.totalorder %s34, 0
      %p153 = por %p151, %p152
      %p154 = scmp.ne.s32.totalorder %s142, %s143
      %p155 = scmp.eq.s32.totalorder %s35, 1
      %p156 = por %p154, %p155
      %p158 = scmp.ne.s32.totalorder %s143, %s157
      %p159 = scmp.eq.s32.totalorder %s35, 0
      %p160 = por %p158, %p159
      %s162 = sadd.s32 %s161, 1
      %p165 = scmp.eq.s32.totalorder %s29, 1
      %p166 = scmp.ne.s32.totalorder %s161, %s163
      %p167 = scmp.eq.s32.totalorder %s29, 0
      %p168 = por %p166, %p167
      %p169 = scmp.ne.s32.totalorder %s161, %s163
      %p170 = scmp.eq.s32.totalorder %s34, 1
      %p171 = por %p169, %p170
      %p172 = scmp.ne.s32.totalorder %s163, %s164
      %p173 = scmp.eq.s32.totalorder %s34, 0
      %p174 = por %p172, %p173
      %p175 = scmp.ne.s32.totalorder %s163, %s164
      %p176 = scmp.eq.s32.totalorder %s35, 1
      %p177 = por %p175, %p176
      %p179 = scmp.ne.s32.totalorder %s164, %s178
      %p180 = scmp.eq.s32.totalorder %s35, 0
      %p181 = por %p179, %p180
      %s183 = sadd.s32 %s182, 1
      %p186 = scmp.eq.s32.totalorder %s29, 1
      %p187 = scmp.ne.s32.totalorder %s182, %s184
      %p188 = scmp.eq.s32.totalorder %s29, 0
      %p189 = por %p187, %p188
      %p190 = scmp.ne.s32.totalorder %s182, %s184
      %p191 = scmp.eq.s32.totalorder %s34, 1
      %p192 = por %p190, %p191
      %p193 = scmp.ne.s32.totalorder %s184, %s185
      %p194 = scmp.eq.s32.totalorder %s34, 0
      %p195 = por %p193, %p194
      %p196 = scmp.ne.s32.totalorder %s184, %s185
      %p197 = scmp.eq.s32.totalorder %s35, 1
      %p198 = por %p196, %p197
      %p200 = scmp.ne.s32.totalorder %s185, %s199
      %p201 = scmp.eq.s32.totalorder %s35, 0
      %p202 = por %p200, %p201
      %s204 = sadd.s32 %s203, 1
      %p207 = scmp.eq.s32.totalorder %s29, 1
      %p208 = scmp.ne.s32.totalorder %s203, %s205
      %p209 = scmp.eq.s32.totalorder %s29, 0
      %p210 = por %p208, %p209
      %p211 = scmp.ne.s32.totalorder %s203, %s205
      %p212 = scmp.eq.s32.totalorder %s34, 1
      %p213 = por %p211, %p212
      %p214 = scmp.ne.s32.totalorder %s205, %s206
      %p215 = scmp.eq.s32.totalorder %s34, 0
      %p216 = por %p214, %p215
      %p217 = scmp.ne.s32.totalorder %s205, %s206
      %p218 = scmp.eq.s32.totalorder %s35, 1
      %p219 = por %p217, %p218
      %p221 = scmp.ne.s32.totalorder %s206, %s220
      %p222 = scmp.eq.s32.totalorder %s35, 0
      %p223 = por %p221, %p222
      %s225 = sadd.s32 %s224, 1
      %p228 = scmp.eq.s32.totalorder %s29, 1
      %p229 = scmp.ne.s32.totalorder %s224, %s226
      %p230 = scmp.eq.s32.totalorder %s29, 0
      %p231 = por %p229, %p230
      %p232 = scmp.ne.s32.totalorder %s224, %s226
      %p233 = scmp.eq.s32.totalorder %s34, 1
      %p234 = por %p232, %p233
      %p235 = scmp.ne.s32.totalorder %s226, %s227
      %p236 = scmp.eq.s32.totalorder %s34, 0
      %p237 = por %p235, %p236
      %p238 = scmp.ne.s32.totalorder %s226, %s227
      %p239 = scmp.eq.s32.totalorder %s35, 1
      %p240 = por %p238, %p239
      %p242 = scmp.ne.s32.totalorder %s227, %s241
      %p243 = scmp.eq.s32.totalorder %s35, 0
      %p244 = por %p242, %p243
      %s245 = ssub.s32 %s36, %s48
      %s246 = ssub.s32 %s37, %s44
      %s247 = sor.u32 %s245, %s246
      %p248 = scmp.eq.s32.totalorder %s247, 0
      %s250 = sadd.s32 %s249, 1
      %s251 = scalar_select %p248, %s249, %s250
      %p254 = pneg %p248
      %p255 = scmp.eq.s32.totalorder %s29, 1
      %p256 = por %p254, %p255
      %p257 = scmp.ne.s32.totalorder %s249, %s252
      %p258 = scmp.eq.s32.totalorder %s29, 0
      %p259 = por %p257, %p258
      %p260 = scmp.ne.s32.totalorder %s249, %s252
      %p261 = scmp.eq.s32.totalorder %s34, 1
      %p262 = por %p260, %p261
      %p263 = scmp.ne.s32.totalorder %s252, %s253
      %p264 = scmp.eq.s32.totalorder %s34, 0
      %p265 = por %p263, %p264
      %p266 = scmp.ne.s32.totalorder %s252, %s253
      %p267 = scmp.eq.s32.totalorder %s35, 1
      %p268 = por %p266, %p267
      %p270 = scmp.ne.s32.totalorder %s253, %s269
      %p271 = scmp.eq.s32.totalorder %s35, 0
      %p272 = por %p270, %p271
      %s273 = ssub.s32 %s36, %s48
      %s274 = ssub.s32 %s37, %s44
      %s275 = sor.u32 %s273, %s274
      %p276 = scmp.eq.s32.totalorder %s275, 0
      %s278 = sadd.s32 %s277, 1
      %s279 = scalar_select %p276, %s277, %s278
      %p282 = pneg %p276
      %p283 = scmp.eq.s32.totalorder %s29, 1
      %p284 = por %p282, %p283
      %p285 = scmp.ne.s32.totalorder %s277, %s280
      %p286 = scmp.eq.s32.totalorder %s29, 0
      %p287 = por %p285, %p286
      %p288 = scmp.ne.s32.totalorder %s277, %s280
      %p289 = scmp.eq.s32.totalorder %s34, 1
      %p290 = por %p288, %p289
      %p291 = scmp.ne.s32.totalorder %s280, %s281
      %p292 = scmp.eq.s32.totalorder %s34, 0
      %p293 = por %p291, %p292
      %p294 = scmp.ne.s32.totalorder %s280, %s281
      %p295 = scmp.eq.s32.totalorder %s35, 1
      %p296 = por %p294, %p295
      %p298 = scmp.ne.s32.totalorder %s281, %s297
      %p299 = scmp.eq.s32.totalorder %s35, 0
      %p300 = por %p298, %p299
      %s301 = ssub.s32 %s36, %s48
      %s302 = ssub.s32 %s37, %s44
      %s303 = sor.u32 %s301, %s302
      %p304 = scmp.eq.s32.totalorder %s303, 0
      %s306 = sadd.s32 %s305, 1
      %s307 = scalar_select %p304, %s305, %s306
      %p310 = pneg %p304
      %p311 = scmp.eq.s32.totalorder %s29, 1
      %p312 = por %p310, %p311
      %p313 = scmp.ne.s32.totalorder %s305, %s308
      %p314 = scmp.eq.s32.totalorder %s29, 0
      %p315 = por %p313, %p314
      %p316 = scmp.ne.s32.totalorder %s305, %s308
      %p317 = scmp.eq.s32.totalorder %s34, 1
      %p318 = por %p316, %p317
      %p319 = scmp.ne.s32.totalorder %s308, %s309
      %p320 = scmp.eq.s32.totalorder %s34, 0
      %p321 = por %p319, %p320
      %p322 = scmp.ne.s32.totalorder %s308, %s309
      %p323 = scmp.eq.s32.totalorder %s35, 1
      %p324 = por %p322, %p323
      %p326 = scmp.ne.s32.totalorder %s309, %s325
      %p327 = scmp.eq.s32.totalorder %s35, 0
      %p328 = por %p326, %p327
      %p329 = scmp.le.s32.totalorder 1, %s29
      %p330 = scmp.lt.s32.totalorder %s29, 3
      %p331 = pnand %p329, %p330
      %p332 = pneg %p331
      // Predicated region
      $region9: #{tpu_custom_call.1} parent=5 // pred_check
        _
      $region10: #{tpu_custom_call.1} parent=5 // pred_check_branch
        %334 = sbr.rel (%p331) target = $region12
      $region11: #{tpu_custom_call.1} parent=5 // pred_region
        %s335 = ssub.s32 %s29, 1
        // Predicated region
        $region13: #{tpu_custom_call.1} parent=11 // pred_check
          %p336 = pneg %p90
        $region14: #{tpu_custom_call.1} parent=11 // pred_check_branch
          %338 = sbr.rel (%p336) target = $region16
        $region15: #{tpu_custom_call.1} parent=11 // pred_region
          _
        $region16: #{tpu_custom_call.1} parent=11 // pred_fallthru
          _
        // Predicated region
        $region17: #{tpu_custom_call.1} parent=11 // pred_check
          %p339 = pneg %p111
        $region18: #{tpu_custom_call.1} parent=11 // pred_check_branch
          %341 = sbr.rel (%p339) target = $region20
        $region19: #{tpu_custom_call.1} parent=11 // pred_region
          _
        $region20: #{tpu_custom_call.1} parent=11 // pred_fallthru
          _
        // Predicated region
        $region21: #{tpu_custom_call.1} parent=11 // pred_check
          %p342 = pneg %p132
        $region22: #{tpu_custom_call.1} parent=11 // pred_check_branch
          %344 = sbr.rel (%p342) target = $region24
        $region23: #{tpu_custom_call.1} parent=11 // pred_region
          %s346 = ssub.s32 1024, 1024
          %347 = vsyncadd [#allocation6], %s346
          %s348 = sshll.u32 [#allocation5], 4
          %s349 = int_to_ptr.vmem [resolvable:$true] %s348
          %354 = dma.hbm_to_vmem [thread:$0]  %s3, 1024, %s349, [#allocation6], 64, 64, 4
        $region24: #{tpu_custom_call.1} parent=11 // pred_fallthru
          _
        // Predicated region
        $region25: #{tpu_custom_call.1} parent=11 // pred_check
          %p355 = pneg %p153
        $region26: #{tpu_custom_call.1} parent=11 // pred_check_branch
          %357 = sbr.rel (%p355) target = $region28
        $region27: #{tpu_custom_call.1} parent=11 // pred_region
          _
        $region28: #{tpu_custom_call.1} parent=11 // pred_fallthru
          _
        // Predicated region
        $region29: #{tpu_custom_call.1} parent=11 // pred_check
          %p358 = pneg %p174
        $region30: #{tpu_custom_call.1} parent=11 // pred_check_branch
          %360 = sbr.rel (%p358) target = $region32
        $region31: #{tpu_custom_call.1} parent=11 // pred_region
          %s362 = ssub.s32 1024, 1024
          %363 = vsyncadd [#allocation6], %s362
          %s364 = sshll.u32 [#allocation7], 4
          %s365 = int_to_ptr.vmem [resolvable:$true] %s364
          %370 = dma.hbm_to_vmem [thread:$0]  %s5, 1024, %s365, [#allocation6], 64, 64, 4
        $region32: #{tpu_custom_call.1} parent=11 // pred_fallthru
          _
        // Predicated region
        $region33: #{tpu_custom_call.1} parent=11 // pred_check
          %p371 = pneg %p195
        $region34: #{tpu_custom_call.1} parent=11 // pred_check_branch
          %373 = sbr.rel (%p371) target = $region36
        $region35: #{tpu_custom_call.1} parent=11 // pred_region
          _
        $region36: #{tpu_custom_call.1} parent=11 // pred_fallthru
          _
        // Predicated region
        $region37: #{tpu_custom_call.1} parent=11 // pred_check
          %p374 = pneg %p216
        $region38: #{tpu_custom_call.1} parent=11 // pred_check_branch
          %376 = sbr.rel (%p374) target = $region40
        $region39: #{tpu_custom_call.1} parent=11 // pred_region
          %s378 = ssub.s32 1024, 1024
          %379 = vsyncadd [#allocation9], %s378
          %s380 = sshll.u32 [#allocation8], 4
          %s381 = int_to_ptr.vmem [resolvable:$true] %s380
          %386 = dma.hbm_to_vmem [thread:$0]  %s7, 1024, %s381, [#allocation9], 64, 64, 4
        $region40: #{tpu_custom_call.1} parent=11 // pred_fallthru
          _
        // Predicated region
        $region41: #{tpu_custom_call.1} parent=11 // pred_check
          %p387 = pneg %p237
        $region42: #{tpu_custom_call.1} parent=11 // pred_check_branch
          %389 = sbr.rel (%p387) target = $region44
        $region43: #{tpu_custom_call.1} parent=11 // pred_region
          _
        $region44: #{tpu_custom_call.1} parent=11 // pred_fallthru
          _
      $region12: #{tpu_custom_call.1} parent=5 // pred_fallthru
        _
      %p390 = scmp.lt.s32.totalorder %s29, 2
      // Predicated region
      $region45: #{tpu_custom_call.1} parent=5 // pred_check
        %p391 = pneg %p390
      $region46: #{tpu_custom_call.1} parent=5 // pred_check_branch
        %393 = sbr.rel (%p391) target = $region48
      $region47: #{tpu_custom_call.1} parent=5 // pred_region
        // Predicated region
        $region49: #{tpu_custom_call.1} parent=47 // pred_check
          %p394 = pneg %p63
        $region50: #{tpu_custom_call.1} parent=47 // pred_check_branch
          %396 = sbr.rel (%p394) target = $region52
        $region51: #{tpu_custom_call.1} parent=47 // pred_region
          %s397 = sand.u32 %s53, 1
          %s398 = scalar_lea.sflag [#allocation3], %s397
          %s399 = sand.u32 %s53, 1
          %s400 = smul.addr %s399, 64
          %s401 = scalar_lea.vmem [#allocation2], %s400
          %s402 = smul.u32 8, %s37
          %s404 = ssub.s32 1024, 1024
          %405 = vsyncadd %s398, %s404
          %s406 = smul.addr %s36, 8
          %s407 = sadd.s32 %s402, %s406
          %s408 = smul.addr %s407, 128
          %s409 = scalar_lea.hbm %s0, %s408
          %s410 = sshll.u32 %s401, 4
          %s411 = int_to_ptr.vmem [resolvable:$true] %s410
          %416 = dma.hbm_to_vmem [thread:$0]  %s409, 1024, %s411, %s398, 128, 128, 8
        $region52: #{tpu_custom_call.1} parent=47 // pred_fallthru
          _
      $region48: #{tpu_custom_call.1} parent=5 // pred_fallthru
        _
      %p417 = scmp.le.s32.totalorder 1, %s29
      %p418 = scmp.lt.s32.totalorder %s29, 3
      %p419 = pnand %p417, %p418
      %p420 = pneg %p419
      // Predicated region
      $region53: #{tpu_custom_call.1} parent=5 // pred_check
        _
      $region54: #{tpu_custom_call.1} parent=5 // pred_check_branch
        %422 = sbr.rel (%p419) target = $region56
      $region55: #{tpu_custom_call.1} parent=5 // pred_region
        %s423 = ssub.s32 %s29, 1
        %s424 = sand.u32 %s56, 1
        %s425 = scalar_lea.sflag [#allocation3], %s424
        %s426 = sand.u32 %s56, 1
        %s427 = smul.addr %s426, 64
        %s428 = scalar_lea.vmem [#allocation2], %s427
        // Predicated region
        $region57: #{tpu_custom_call.1} parent=55 // pred_check
          %p429 = pneg %p69
        $region58: #{tpu_custom_call.1} parent=55 // pred_check_branch
          %431 = sbr.rel (%p429) target = $region60
        $region59: #{tpu_custom_call.1} parent=55 // pred_region
          %432 = dma.done %s425, 1024
        $region60: #{tpu_custom_call.1} parent=55 // pred_fallthru
          _
        // Predicated region
        $region61: #{tpu_custom_call.1} parent=55 // pred_check
          %p433 = pneg %p132
        $region62: #{tpu_custom_call.1} parent=55 // pred_check_branch
          %435 = sbr.rel (%p433) target = $region64
        $region63: #{tpu_custom_call.1} parent=55 // pred_region
          %436 = dma.done [#allocation6], 1024
        $region64: #{tpu_custom_call.1} parent=55 // pred_fallthru
          _
        // Predicated region
        $region65: #{tpu_custom_call.1} parent=55 // pred_check
          %p437 = pneg %p174
        $region66: #{tpu_custom_call.1} parent=55 // pred_check_branch
          %439 = sbr.rel (%p437) target = $region68
        $region67: #{tpu_custom_call.1} parent=55 // pred_region
          %440 = dma.done [#allocation6], 1024
        $region68: #{tpu_custom_call.1} parent=55 // pred_fallthru
          _
        // Predicated region
        $region69: #{tpu_custom_call.1} parent=55 // pred_check
          %p441 = pneg %p216
        $region70: #{tpu_custom_call.1} parent=55 // pred_check_branch
          %443 = sbr.rel (%p441) target = $region72
        $region71: #{tpu_custom_call.1} parent=55 // pred_region
          %444 = dma.done [#allocation9], 1024
        $region72: #{tpu_custom_call.1} parent=55 // pred_fallthru
          _
        %s445 = sand.u32 %s56, 1
        %s446 = scalar_lea.sflag [#allocation3], %s445
        %s447 = sand.u32 %s56, 1
        %s448 = smul.addr %s447, 64
        %s449 = scalar_lea.vmem [#allocation2], %s448
        %p450 = pneg %p69
        %p451 = pneg %p66
        %p452 = pneg %p90
        %p453 = pneg %p87
        %p454 = pneg %p111
        %p455 = pneg %p108
        %p456 = pneg %p132
        %p457 = pneg %p129
        %p458 = pneg %p153
        %p459 = pneg %p150
        %p460 = pneg %p174
        %p461 = pneg %p171
        %p462 = pneg %p195
        %p463 = pneg %p192
        %p464 = pneg %p216
        %p465 = pneg %p213
        %p466 = pneg %p237
        %p467 = pneg %p234
        %p468 = pneg %p265
        %p469 = pneg %p262
        %s470 = sand.u32 %s252, 1
        %s471 = scalar_lea.sflag [#allocation4], %s470
        %s472 = sand.u32 %s252, 1
        %s473 = smul.addr %s472, 32
        %s474 = scalar_lea.vmem [#allocation10], %s473
        %p475 = pneg %p293
        %p476 = pneg %p290
        %s477 = sand.u32 %s34, 1
        %s478 = scalar_lea.sflag [#allocation12], %s477
        %s479 = sand.u32 %s280, 1
        %s480 = smul.addr %s479, 32
        %s481 = scalar_lea.vmem [#allocation11], %s480
        %p482 = pneg %p321
        %p483 = pneg %p318
        %s484 = sand.u32 %s34, 1
        %s485 = scalar_lea.sflag [#allocation12], %s484
        %s486 = sand.u32 %s308, 1
        %s487 = smul.addr %s486, 32
        %s488 = scalar_lea.vmem [#allocation13], %s487
        %s489 = smul.u32 8, %s39
        %s490 = smul.u32 8, %s39
        %s491 = smul.u32 8, %s39
        %s492 = smul.u32 8, %s39
        %v494 = vld [vmem:[%s428] sm:$0xff]
        %v495 = vld [vmem:[%s428 + $0x8] sm:$0xff]
        %v496 = vld [vmem:[%s428 + $0x10] sm:$0xff]
        %v497 = vld [vmem:[%s428 + $0x18] sm:$0xff]
        %v498 = vld [vmem:[%s428 + $0x20] sm:$0xff]
        %v499 = vld [vmem:[%s428 + $0x28] sm:$0xff]
        %v500 = vld [vmem:[%s428 + $0x30] sm:$0xff]
        %v501 = vld [vmem:[%s428 + $0x38] sm:$0xff]
        %v502 = vld [vmem:[%s1] sm:$0x1]
        %v503 = vld [vmem:[%s2] sm:$0x1]
        %504 = vadd.xlane.f32.xlu0 %v494
        %v505 = vpop.xlane.xlu0 %504
        %506 = vadd.xlane.f32.xlu0 %v495
        %v507 = vpop.xlane.xlu0 %506
        %508 = vadd.xlane.f32.xlu0 %v496
        %v509 = vpop.xlane.xlu0 %508
        %510 = vadd.xlane.f32.xlu0 %v497
        %v511 = vpop.xlane.xlu0 %510
        %512 = vadd.xlane.f32.xlu0 %v498
        %v513 = vpop.xlane.xlu0 %512
        %514 = vadd.xlane.f32.xlu0 %v499
        %v515 = vpop.xlane.xlu0 %514
        %516 = vadd.xlane.f32.xlu0 %v500
        %v517 = vpop.xlane.xlu0 %516
        %518 = vadd.xlane.f32.xlu0 %v501
        %v519 = vpop.xlane.xlu0 %518
        %v520 = vrcp.pop 128.0
        %v521 = vmul.f32 %v505, %v520
        %v522 = vmul.f32 %v507, %v520
        %v523 = vmul.f32 %v509, %v520
        %v524 = vmul.f32 %v511, %v520
        %v525 = vmul.f32 %v513, %v520
        %v526 = vmul.f32 %v515, %v520
        %v527 = vmul.f32 %v517, %v520
        %v528 = vmul.f32 %v519, %v520
        %v529 = vsub.f32 %v494, %v521
        %v530 = vsub.f32 %v495, %v522
        %v531 = vsub.f32 %v496, %v523
        %v532 = vsub.f32 %v497, %v524
        %v533 = vsub.f32 %v498, %v525
        %v534 = vsub.f32 %v499, %v526
        %v535 = vsub.f32 %v500, %v527
        %v536 = vsub.f32 %v501, %v528
        %v537 = vmul.f32 %v529, %v529
        %v538 = vmul.f32 %v530, %v530
        %v539 = vmul.f32 %v531, %v531
        %v540 = vmul.f32 %v532, %v532
        %v541 = vmul.f32 %v533, %v533
        %v542 = vmul.f32 %v534, %v534
        %v543 = vmul.f32 %v535, %v535
        %v544 = vmul.f32 %v536, %v536
        %545 = vadd.xlane.f32.xlu0 %v537
        %v546 = vpop.xlane.xlu0 %545
        %547 = vadd.xlane.f32.xlu0 %v538
        %v548 = vpop.xlane.xlu0 %547
        %549 = vadd.xlane.f32.xlu0 %v539
        %v550 = vpop.xlane.xlu0 %549
        %551 = vadd.xlane.f32.xlu0 %v540
        %v552 = vpop.xlane.xlu0 %551
        %553 = vadd.xlane.f32.xlu0 %v541
        %v554 = vpop.xlane.xlu0 %553
        %555 = vadd.xlane.f32.xlu0 %v542
        %v556 = vpop.xlane.xlu0 %555
        %557 = vadd.xlane.f32.xlu0 %v543
        %v558 = vpop.xlane.xlu0 %557
        %559 = vadd.xlane.f32.xlu0 %v544
        %v560 = vpop.xlane.xlu0 %559
        %v561 = vmul.f32 %v546, %v520
        %v562 = vmul.f32 %v548, %v520
        %v563 = vmul.f32 %v550, %v520
        %v564 = vmul.f32 %v552, %v520
        %v565 = vmul.f32 %v554, %v520
        %v566 = vmul.f32 %v556, %v520
        %v567 = vmul.f32 %v558, %v520
        %v568 = vmul.f32 %v560, %v520
        %v569 = vadd.f32 %v561, 1e-05
        %v570 = vadd.f32 %v562, 1e-05
        %v571 = vadd.f32 %v563, 1e-05
        %v572 = vadd.f32 %v564, 1e-05
        %v573 = vadd.f32 %v565, 1e-05
        %v574 = vadd.f32 %v566, 1e-05
        %v575 = vadd.f32 %v567, 1e-05
        %v576 = vadd.f32 %v568, 1e-05
        %v577 = vrsqrt.pop %v569
        %v578 = vrsqrt.pop %v570
        %v579 = vrsqrt.pop %v571
        %v580 = vrsqrt.pop %v572
        %v581 = vrsqrt.pop %v573
        %v582 = vrsqrt.pop %v574
        %v583 = vrsqrt.pop %v575
        %v584 = vrsqrt.pop %v576
        %v585 = vmul.f32 %v529, %v577
        %v586 = vmul.f32 %v530, %v578
        %v587 = vmul.f32 %v531, %v579
        %v588 = vmul.f32 %v532, %v580
        %v589 = vmul.f32 %v533, %v581
        %v590 = vmul.f32 %v534, %v582
        %v591 = vmul.f32 %v535, %v583
        %v592 = vmul.f32 %v536, %v584
        %v594 = vlaneseq
        %v595 = vshrl.u32 %v594, 7
        %v596 = vsub.s32 0, %v595
        %v597 = vrot.slane %v502, %v596
        %v599 = vmul.f32 %v585, %v597
        %v600 = vmul.f32 %v586, %v597
        %v601 = vmul.f32 %v587, %v597
        %v602 = vmul.f32 %v588, %v597
        %v603 = vmul.f32 %v589, %v597
        %v604 = vmul.f32 %v590, %v597
        %v605 = vmul.f32 %v591, %v597
        %v606 = vmul.f32 %v592, %v597
        %v608 = vlaneseq
        %v609 = vshrl.u32 %v608, 7
        %v610 = vsub.s32 0, %v609
        %v611 = vrot.slane %v503, %v610
        %v613 = vadd.f32 %v599, %v611
        %v614 = vadd.f32 %v600, %v611
        %v615 = vadd.f32 %v601, %v611
        %v616 = vadd.f32 %v602, %v611
        %v617 = vadd.f32 %v603, %v611
        %v618 = vadd.f32 %v604, %v611
        %v619 = vadd.f32 %v605, %v611
        %v620 = vadd.f32 %v606, %v611
        %v621 = vpack.c.bf16 %v614, %v613
        %v622 = vpack.c.bf16 %v616, %v615
        %v623 = vpack.c.bf16 %v618, %v617
        %v624 = vpack.c.bf16 %v620, %v619
        %v625 = vld [vmem:[#allocation5] sm:$0xf]
        %v626 = vld [vmem:[#allocation5 + $0x4] sm:$0xf]
        %v627 = vld [vmem:[#allocation5 + $0x8] sm:$0xf]
        %v628 = vld [vmem:[#allocation5 + $0xc] sm:$0xf]
        %v629 = vld [vmem:[#allocation5 + $0x10] sm:$0xf]
        %v630 = vld [vmem:[#allocation5 + $0x14] sm:$0xf]
        %v631 = vld [vmem:[#allocation5 + $0x18] sm:$0xf]
        %v632 = vld [vmem:[#allocation5 + $0x1c] sm:$0xf]
        %v633 = vld [vmem:[#allocation5 + $0x20] sm:$0xf]
        %v634 = vld [vmem:[#allocation5 + $0x24] sm:$0xf]
        %v635 = vld [vmem:[#allocation5 + $0x28] sm:$0xf]
        %v636 = vld [vmem:[#allocation5 + $0x2c] sm:$0xf]
        %v637 = vld [vmem:[#allocation5 + $0x30] sm:$0xf]
        %v638 = vld [vmem:[#allocation5 + $0x34] sm:$0xf]
        %v639 = vld [vmem:[#allocation5 + $0x38] sm:$0xf]
        %v640 = vld [vmem:[#allocation5 + $0x3c] sm:$0xf]
        %v641 = vld [vmem:[%s4] sm:$0x1]
        %v643 = vlaneseq
        %v644 = vshrl.u32 %v643, 7
        %v645 = vsub.s32 0, %v644
        %v646 = vrot.slane %v641, %v645
        %v664 = vunpack.c.l.b16 %v625
        %v665 = vunpack.c.l.b16 %v626
        %v666 = vunpack.c.l.b16 %v627
        %v667 = vunpack.c.l.b16 %v628
        %v668 = vunpack.c.l.b16 %v629
        %v669 = vunpack.c.l.b16 %v630
        %v670 = vunpack.c.l.b16 %v631
        %v671 = vunpack.c.l.b16 %v632
        %v672 = vunpack.c.l.b16 %v633
        %v673 = vunpack.c.l.b16 %v634
        %v674 = vunpack.c.l.b16 %v635
        %v675 = vunpack.c.l.b16 %v636
        %v676 = vunpack.c.l.b16 %v637
        %v677 = vunpack.c.l.b16 %v638
        %v678 = vunpack.c.l.b16 %v639
        %v679 = vunpack.c.l.b16 %v640
        %v680 = vpack.c.b16 %v665, %v664
        %v681 = vpack.c.b16 %v667, %v666
        %v682 = vpack.c.b16 %v669, %v668
        %v683 = vpack.c.b16 %v671, %v670
        %v684 = vpack.c.b16 %v673, %v672
        %v685 = vpack.c.b16 %v675, %v674
        %v686 = vpack.c.b16 %v677, %v676
        %v687 = vpack.c.b16 %v679, %v678
        %696 = vmatprep.subr.bf16.mxu0 0
        %697 = vmatpush1.bf16.msra.mxu0 %v680
        %698 = vmatprep.subr.bf16.mxu0 0
        %699 = vmatpush1.bf16.msra.mxu0 %v681
        %700 = vmatprep.subr.bf16.mxu0 0
        %701 = vmatpush1.bf16.msra.mxu0 %v682
        %702 = vmatprep.subr.bf16.mxu0 0
        %703 = vmatpush1.bf16.msra.mxu0 %v683
        %704 = vmatprep.subr.bf16.mxu0 0
        %705 = vmatpush1.bf16.msra.mxu0 %v684
        %706 = vmatprep.subr.bf16.mxu0 0
        %707 = vmatpush1.bf16.msra.mxu0 %v685
        %708 = vmatprep.subr.bf16.mxu0 0
        %709 = vmatpush1.bf16.msra.mxu0 %v686
        %710 = vmatprep.subr.bf16.mxu0 0
        %711 = vmatpush1.bf16.msra.mxu0 %v687
        %712 = vmatprep.subr.bf16.mxu0 0
        %713 = vmatpush1.bf16.msra.mxu0 0
        %714 = vmatprep.subr.bf16.mxu0 0
        %715 = vmatpush1.bf16.msra.mxu0 0
        %716 = vmatprep.subr.bf16.mxu0 0
        %717 = vmatpush1.bf16.msra.mxu0 0
        %718 = vmatprep.subr.bf16.mxu0 0
        %719 = vmatpush1.bf16.msra.mxu0 0
        %720 = vmatprep.subr.bf16.mxu0 0
        %721 = vmatpush1.bf16.msra.mxu0 0
        %722 = vmatprep.subr.bf16.mxu0 0
        %723 = vmatpush1.bf16.msra.mxu0 0
        %724 = vmatprep.subr.bf16.mxu0 0
        %725 = vmatpush1.bf16.msra.mxu0 0
        %726 = vmatprep.subr.bf16.mxu0 0
        %727 = vmatpush1.bf16.msra.mxu0 0
        %728 = vmatprep.mubr.bf16.mxu0 0
        %729 = vmatmul.mubr.bf16.gmra.mrb[0].mxu0 %v621
        %v730 = vpop.f32.mrb[0].mxu0
        %v731 = vadd.f32 %v646, %v730
        %v732 = vpop.f32.mrb[0].mxu0
        %v733 = vpop.f32.mrb[0].mxu0
        %v734 = vadd.f32 %v646, %v733
        %v735 = vpop.f32.mrb[0].mxu0
        %736 = vmatprep.mubr.bf16.mxu0 0
        %737 = vmatmul.mubr.bf16.gmra.mrb[0].mxu0 %v622
        %v738 = vpop.f32.mrb[0].mxu0
        %v739 = vadd.f32 %v646, %v738
        %v740 = vpop.f32.mrb[0].mxu0
        %v741 = vpop.f32.mrb[0].mxu0
        %v742 = vadd.f32 %v646, %v741
        %v743 = vpop.f32.mrb[0].mxu0
        %744 = vmatprep.mubr.bf16.mxu0 0
        %745 = vmatmul.mubr.bf16.gmra.mrb[0].mxu0 %v623
        %v746 = vpop.f32.mrb[0].mxu0
        %v747 = vadd.f32 %v646, %v746
        %v748 = vpop.f32.mrb[0].mxu0
        %v749 = vpop.f32.mrb[0].mxu0
        %v750 = vadd.f32 %v646, %v749
        %v751 = vpop.f32.mrb[0].mxu0
        %752 = vmatprep.mubr.bf16.mxu0 0
        %753 = vmatmul.mubr.bf16.gmra.mrb[0].mxu0 %v624
        %v754 = vpop.f32.mrb[0].mxu0
        %v755 = vadd.f32 %v646, %v754
        %v756 = vpop.f32.mrb[0].mxu0
        %v757 = vpop.f32.mrb[0].mxu0
        %v758 = vadd.f32 %v646, %v757
        %v759 = vpop.f32.mrb[0].mxu0
        %760 = vdwg.mxu0
        %v761 = vpack.c.bf16 %v734, %v731
        %v762 = vpack.c.bf16 %v742, %v739
        %v763 = vpack.c.bf16 %v750, %v747
        %v764 = vpack.c.bf16 %v758, %v755
        %v769 = vunpack.c.l.b16 %v761
        %v770 = vunpack.c.h.b16 %v761
        %v771 = vunpack.c.l.b16 %v762
        %v772 = vunpack.c.h.b16 %v762
        %v773 = vunpack.c.l.b16 %v763
        %v774 = vunpack.c.h.b16 %v763
        %v775 = vunpack.c.l.b16 %v764
        %v776 = vunpack.c.h.b16 %v764
        %v777 = vpack.c.b16 %v769, %v769
        %v778 = vpack.c.b16 %v770, %v770
        %v779 = vpack.c.b16 %v771, %v771
        %v780 = vpack.c.b16 %v772, %v772
        %v781 = vpack.c.b16 %v773, %v773
        %v782 = vpack.c.b16 %v774, %v774
        %v783 = vpack.c.b16 %v775, %v775
        %v784 = vpack.c.b16 %v776, %v776
        %793 = vst [vmem:[%s474] sm:$0xf] %v777
        %794 = vst [vmem:[%s474 + $0x4] sm:$0xf] %v778
        %795 = vst [vmem:[%s474 + $0x8] sm:$0xf] %v779
        %796 = vst [vmem:[%s474 + $0xc] sm:$0xf] %v780
        %797 = vst [vmem:[%s474 + $0x10] sm:$0xf] %v781
        %798 = vst [vmem:[%s474 + $0x14] sm:$0xf] %v782
        %799 = vst [vmem:[%s474 + $0x18] sm:$0xf] %v783
        %800 = vst [vmem:[%s474 + $0x1c] sm:$0xf] %v784
        %v801 = vld [vmem:[#allocation7] sm:$0xf]
        %v802 = vld [vmem:[#allocation7 + $0x4] sm:$0xf]
        %v803 = vld [vmem:[#allocation7 + $0x8] sm:$0xf]
        %v804 = vld [vmem:[#allocation7 + $0xc] sm:$0xf]
        %v805 = vld [vmem:[#allocation7 + $0x10] sm:$0xf]
        %v806 = vld [vmem:[#allocation7 + $0x14] sm:$0xf]
        %v807 = vld [vmem:[#allocation7 + $0x18] sm:$0xf]
        %v808 = vld [vmem:[#allocation7 + $0x1c] sm:$0xf]
        %v809 = vld [vmem:[#allocation7 + $0x20] sm:$0xf]
        %v810 = vld [vmem:[#allocation7 + $0x24] sm:$0xf]
        %v811 = vld [vmem:[#allocation7 + $0x28] sm:$0xf]
        %v812 = vld [vmem:[#allocation7 + $0x2c] sm:$0xf]
        %v813 = vld [vmem:[#allocation7 + $0x30] sm:$0xf]
        %v814 = vld [vmem:[#allocation7 + $0x34] sm:$0xf]
        %v815 = vld [vmem:[#allocation7 + $0x38] sm:$0xf]
        %v816 = vld [vmem:[#allocation7 + $0x3c] sm:$0xf]
        %v817 = vld [vmem:[%s6] sm:$0x1]
        %v819 = vlaneseq
        %v820 = vshrl.u32 %v819, 7
        %v821 = vsub.s32 0, %v820
        %v822 = vrot.slane %v817, %v821
        %v840 = vunpack.c.l.b16 %v801
        %v841 = vunpack.c.l.b16 %v802
        %v842 = vunpack.c.l.b16 %v803
        %v843 = vunpack.c.l.b16 %v804
        %v844 = vunpack.c.l.b16 %v805
        %v845 = vunpack.c.l.b16 %v806
        %v846 = vunpack.c.l.b16 %v807
        %v847 = vunpack.c.l.b16 %v808
        %v848 = vunpack.c.l.b16 %v809
        %v849 = vunpack.c.l.b16 %v810
        %v850 = vunpack.c.l.b16 %v811
        %v851 = vunpack.c.l.b16 %v812
        %v852 = vunpack.c.l.b16 %v813
        %v853 = vunpack.c.l.b16 %v814
        %v854 = vunpack.c.l.b16 %v815
        %v855 = vunpack.c.l.b16 %v816
        %v856 = vpack.c.b16 %v841, %v840
        %v857 = vpack.c.b16 %v843, %v842
        %v858 = vpack.c.b16 %v845, %v844
        %v859 = vpack.c.b16 %v847, %v846
        %v860 = vpack.c.b16 %v849, %v848
        %v861 = vpack.c.b16 %v851, %v850
        %v862 = vpack.c.b16 %v853, %v852
        %v863 = vpack.c.b16 %v855, %v854
        %872 = vmatprep.subr.bf16.mxu0 0
        %873 = vmatpush1.bf16.msra.mxu0 %v856
        %874 = vmatprep.subr.bf16.mxu0 0
        %875 = vmatpush1.bf16.msra.mxu0 %v857
        %876 = vmatprep.subr.bf16.mxu0 0
        %877 = vmatpush1.bf16.msra.mxu0 %v858
        %878 = vmatprep.subr.bf16.mxu0 0
        %879 = vmatpush1.bf16.msra.mxu0 %v859
        %880 = vmatprep.subr.bf16.mxu0 0
        %881 = vmatpush1.bf16.msra.mxu0 %v860
        %882 = vmatprep.subr.bf16.mxu0 0
        %883 = vmatpush1.bf16.msra.mxu0 %v861
        %884 = vmatprep.subr.bf16.mxu0 0
        %885 = vmatpush1.bf16.msra.mxu0 %v862
        %886 = vmatprep.subr.bf16.mxu0 0
        %887 = vmatpush1.bf16.msra.mxu0 %v863
        %888 = vmatprep.subr.bf16.mxu0 0
        %889 = vmatpush1.bf16.msra.mxu0 0
        %890 = vmatprep.subr.bf16.mxu0 0
        %891 = vmatpush1.bf16.msra.mxu0 0
        %892 = vmatprep.subr.bf16.mxu0 0
        %893 = vmatpush1.bf16.msra.mxu0 0
        %894 = vmatprep.subr.bf16.mxu0 0
        %895 = vmatpush1.bf16.msra.mxu0 0
        %896 = vmatprep.subr.bf16.mxu0 0
        %897 = vmatpush1.bf16.msra.mxu0 0
        %898 = vmatprep.subr.bf16.mxu0 0
        %899 = vmatpush1.bf16.msra.mxu0 0
        %900 = vmatprep.subr.bf16.mxu0 0
        %901 = vmatpush1.bf16.msra.mxu0 0
        %902 = vmatprep.subr.bf16.mxu0 0
        %903 = vmatpush1.bf16.msra.mxu0 0
        %904 = vmatprep.mubr.bf16.mxu0 0
        %905 = vmatmul.mubr.bf16.gmra.mrb[0].mxu0 %v621
        %v906 = vpop.f32.mrb[0].mxu0
        %v907 = vadd.f32 %v822, %v906
        %v908 = vpop.f32.mrb[0].mxu0
        %v909 = vpop.f32.mrb[0].mxu0
        %v910 = vadd.f32 %v822, %v909
        %v911 = vpop.f32.mrb[0].mxu0
        %912 = vmatprep.mubr.bf16.mxu0 0
        %913 = vmatmul.mubr.bf16.gmra.mrb[0].mxu0 %v622
        %v914 = vpop.f32.mrb[0].mxu0
        %v915 = vadd.f32 %v822, %v914
        %v916 = vpop.f32.mrb[0].mxu0
        %v917 = vpop.f32.mrb[0].mxu0
        %v918 = vadd.f32 %v822, %v917
        %v919 = vpop.f32.mrb[0].mxu0
        %920 = vmatprep.mubr.bf16.mxu0 0
        %921 = vmatmul.mubr.bf16.gmra.mrb[0].mxu0 %v623
        %v922 = vpop.f32.mrb[0].mxu0
        %v923 = vadd.f32 %v822, %v922
        %v924 = vpop.f32.mrb[0].mxu0
        %v925 = vpop.f32.mrb[0].mxu0
        %v926 = vadd.f32 %v822, %v925
        %v927 = vpop.f32.mrb[0].mxu0
        %928 = vmatprep.mubr.bf16.mxu0 0
        %929 = vmatmul.mubr.bf16.gmra.mrb[0].mxu0 %v624
        %v930 = vpop.f32.mrb[0].mxu0
        %v931 = vadd.f32 %v822, %v930
        %v932 = vpop.f32.mrb[0].mxu0
        %v933 = vpop.f32.mrb[0].mxu0
        %v934 = vadd.f32 %v822, %v933
        %v935 = vpop.f32.mrb[0].mxu0
        %936 = vdwg.mxu0
        %v937 = vpack.c.bf16 %v910, %v907
        %v938 = vpack.c.bf16 %v918, %v915
        %v939 = vpack.c.bf16 %v926, %v923
        %v940 = vpack.c.bf16 %v934, %v931
        %v945 = vunpack.c.l.b16 %v937
        %v946 = vunpack.c.h.b16 %v937
        %v947 = vunpack.c.l.b16 %v938
        %v948 = vunpack.c.h.b16 %v938
        %v949 = vunpack.c.l.b16 %v939
        %v950 = vunpack.c.h.b16 %v939
        %v951 = vunpack.c.l.b16 %v940
        %v952 = vunpack.c.h.b16 %v940
        %v953 = vpack.c.b16 %v945, %v945
        %v954 = vpack.c.b16 %v946, %v946
        %v955 = vpack.c.b16 %v947, %v947
        %v956 = vpack.c.b16 %v948, %v948
        %v957 = vpack.c.b16 %v949, %v949
        %v958 = vpack.c.b16 %v950, %v950
        %v959 = vpack.c.b16 %v951, %v951
        %v960 = vpack.c.b16 %v952, %v952
        %969 = vst [vmem:[%s481] sm:$0xf] %v953
        %970 = vst [vmem:[%s481 + $0x4] sm:$0xf] %v954
        %971 = vst [vmem:[%s481 + $0x8] sm:$0xf] %v955
        %972 = vst [vmem:[%s481 + $0xc] sm:$0xf] %v956
        %973 = vst [vmem:[%s481 + $0x10] sm:$0xf] %v957
        %974 = vst [vmem:[%s481 + $0x14] sm:$0xf] %v958
        %975 = vst [vmem:[%s481 + $0x18] sm:$0xf] %v959
        %976 = vst [vmem:[%s481 + $0x1c] sm:$0xf] %v960
        %v977 = vld [vmem:[#allocation8] sm:$0xf]
        %v978 = vld [vmem:[#allocation8 + $0x4] sm:$0xf]
        %v979 = vld [vmem:[#allocation8 + $0x8] sm:$0xf]
        %v980 = vld [vmem:[#allocation8 + $0xc] sm:$0xf]
        %v981 = vld [vmem:[#allocation8 + $0x10] sm:$0xf]
        %v982 = vld [vmem:[#allocation8 + $0x14] sm:$0xf]
        %v983 = vld [vmem:[#allocation8 + $0x18] sm:$0xf]
        %v984 = vld [vmem:[#allocation8 + $0x1c] sm:$0xf]
        %v985 = vld [vmem:[#allocation8 + $0x20] sm:$0xf]
        %v986 = vld [vmem:[#allocation8 + $0x24] sm:$0xf]
        %v987 = vld [vmem:[#allocation8 + $0x28] sm:$0xf]
        %v988 = vld [vmem:[#allocation8 + $0x2c] sm:$0xf]
        %v989 = vld [vmem:[#allocation8 + $0x30] sm:$0xf]
        %v990 = vld [vmem:[#allocation8 + $0x34] sm:$0xf]
        %v991 = vld [vmem:[#allocation8 + $0x38] sm:$0xf]
        %v992 = vld [vmem:[#allocation8 + $0x3c] sm:$0xf]
        %v993 = vld [vmem:[%s8] sm:$0x1]
        %v995 = vlaneseq
        %v996 = vshrl.u32 %v995, 7
        %v997 = vsub.s32 0, %v996
        %v998 = vrot.slane %v993, %v997
        %v1016 = vunpack.c.l.b16 %v977
        %v1017 = vunpack.c.l.b16 %v978
        %v1018 = vunpack.c.l.b16 %v979
        %v1019 = vunpack.c.l.b16 %v980
        %v1020 = vunpack.c.l.b16 %v981
        %v1021 = vunpack.c.l.b16 %v982
        %v1022 = vunpack.c.l.b16 %v983
        %v1023 = vunpack.c.l.b16 %v984
        %v1024 = vunpack.c.l.b16 %v985
        %v1025 = vunpack.c.l.b16 %v986
        %v1026 = vunpack.c.l.b16 %v987
        %v1027 = vunpack.c.l.b16 %v988
        %v1028 = vunpack.c.l.b16 %v989
        %v1029 = vunpack.c.l.b16 %v990
        %v1030 = vunpack.c.l.b16 %v991
        %v1031 = vunpack.c.l.b16 %v992
        %v1032 = vpack.c.b16 %v1017, %v1016
        %v1033 = vpack.c.b16 %v1019, %v1018
        %v1034 = vpack.c.b16 %v1021, %v1020
        %v1035 = vpack.c.b16 %v1023, %v1022
        %v1036 = vpack.c.b16 %v1025, %v1024
        %v1037 = vpack.c.b16 %v1027, %v1026
        %v1038 = vpack.c.b16 %v1029, %v1028
        %v1039 = vpack.c.b16 %v1031, %v1030
        %1048 = vmatprep.subr.bf16.mxu0 0
        %1049 = vmatpush1.bf16.msra.mxu0 %v1032
        %1050 = vmatprep.subr.bf16.mxu0 0
        %1051 = vmatpush1.bf16.msra.mxu0 %v1033
        %1052 = vmatprep.subr.bf16.mxu0 0
        %1053 = vmatpush1.bf16.msra.mxu0 %v1034
        %1054 = vmatprep.subr.bf16.mxu0 0
        %1055 = vmatpush1.bf16.msra.mxu0 %v1035
        %1056 = vmatprep.subr.bf16.mxu0 0
        %1057 = vmatpush1.bf16.msra.mxu0 %v1036
        %1058 = vmatprep.subr.bf16.mxu0 0
        %1059 = vmatpush1.bf16.msra.mxu0 %v1037
        %1060 = vmatprep.subr.bf16.mxu0 0
        %1061 = vmatpush1.bf16.msra.mxu0 %v1038
        %1062 = vmatprep.subr.bf16.mxu0 0
        %1063 = vmatpush1.bf16.msra.mxu0 %v1039
        %1064 = vmatprep.subr.bf16.mxu0 0
        %1065 = vmatpush1.bf16.msra.mxu0 0
        %1066 = vmatprep.subr.bf16.mxu0 0
        %1067 = vmatpush1.bf16.msra.mxu0 0
        %1068 = vmatprep.subr.bf16.mxu0 0
        %1069 = vmatpush1.bf16.msra.mxu0 0
        %1070 = vmatprep.subr.bf16.mxu0 0
        %1071 = vmatpush1.bf16.msra.mxu0 0
        %1072 = vmatprep.subr.bf16.mxu0 0
        %1073 = vmatpush1.bf16.msra.mxu0 0
        %1074 = vmatprep.subr.bf16.mxu0 0
        %1075 = vmatpush1.bf16.msra.mxu0 0
        %1076 = vmatprep.subr.bf16.mxu0 0
        %1077 = vmatpush1.bf16.msra.mxu0 0
        %1078 = vmatprep.subr.bf16.mxu0 0
        %1079 = vmatpush1.bf16.msra.mxu0 0
        %1080 = vmatprep.mubr.bf16.mxu0 0
        %1081 = vmatmul.mubr.bf16.gmra.mrb[0].mxu0 %v621
        %v1082 = vpop.f32.mrb[0].mxu0
        %v1083 = vadd.f32 %v998, %v1082
        %v1084 = vpop.f32.mrb[0].mxu0
        %v1085 = vpop.f32.mrb[0].mxu0
        %v1086 = vadd.f32 %v998, %v1085
        %v1087 = vpop.f32.mrb[0].mxu0
        %1088 = vmatprep.mubr.bf16.mxu0 0
        %1089 = vmatmul.mubr.bf16.gmra.mrb[0].mxu0 %v622
        %v1090 = vpop.f32.mrb[0].mxu0
        %v1091 = vadd.f32 %v998, %v1090
        %v1092 = vpop.f32.mrb[0].mxu0
        %v1093 = vpop.f32.mrb[0].mxu0
        %v1094 = vadd.f32 %v998, %v1093
        %v1095 = vpop.f32.mrb[0].mxu0
        %1096 = vmatprep.mubr.bf16.mxu0 0
        %1097 = vmatmul.mubr.bf16.gmra.mrb[0].mxu0 %v623
        %v1098 = vpop.f32.mrb[0].mxu0
        %v1099 = vadd.f32 %v998, %v1098
        %v1100 = vpop.f32.mrb[0].mxu0
        %v1101 = vpop.f32.mrb[0].mxu0
        %v1102 = vadd.f32 %v998, %v1101
        %v1103 = vpop.f32.mrb[0].mxu0
        %1104 = vmatprep.mubr.bf16.mxu0 0
        %1105 = vmatmul.mubr.bf16.gmra.mrb[0].mxu0 %v624
        %v1106 = vpop.f32.mrb[0].mxu0
        %v1107 = vadd.f32 %v998, %v1106
        %v1108 = vpop.f32.mrb[0].mxu0
        %v1109 = vpop.f32.mrb[0].mxu0
        %v1110 = vadd.f32 %v998, %v1109
        %v1111 = vpop.f32.mrb[0].mxu0
        %1112 = vdwg.mxu0
        %v1113 = vpack.c.bf16 %v1086, %v1083
        %v1114 = vpack.c.bf16 %v1094, %v1091
        %v1115 = vpack.c.bf16 %v1102, %v1099
        %v1116 = vpack.c.bf16 %v1110, %v1107
        %v1121 = vunpack.c.l.b16 %v1113
        %v1122 = vunpack.c.h.b16 %v1113
        %v1123 = vunpack.c.l.b16 %v1114
        %v1124 = vunpack.c.h.b16 %v1114
        %v1125 = vunpack.c.l.b16 %v1115
        %v1126 = vunpack.c.h.b16 %v1115
        %v1127 = vunpack.c.l.b16 %v1116
        %v1128 = vunpack.c.h.b16 %v1116
        %v1129 = vpack.c.b16 %v1121, %v1121
        %v1130 = vpack.c.b16 %v1122, %v1122
        %v1131 = vpack.c.b16 %v1123, %v1123
        %v1132 = vpack.c.b16 %v1124, %v1124
        %v1133 = vpack.c.b16 %v1125, %v1125
        %v1134 = vpack.c.b16 %v1126, %v1126
        %v1135 = vpack.c.b16 %v1127, %v1127
        %v1136 = vpack.c.b16 %v1128, %v1128
        %1145 = vst [vmem:[%s488] sm:$0xf] %v1129
        %1146 = vst [vmem:[%s488 + $0x4] sm:$0xf] %v1130
        %1147 = vst [vmem:[%s488 + $0x8] sm:$0xf] %v1131
        %1148 = vst [vmem:[%s488 + $0xc] sm:$0xf] %v1132
        %1149 = vst [vmem:[%s488 + $0x10] sm:$0xf] %v1133
        %1150 = vst [vmem:[%s488 + $0x14] sm:$0xf] %v1134
        %1151 = vst [vmem:[%s488 + $0x18] sm:$0xf] %v1135
        %1152 = vst [vmem:[%s488 + $0x1c] sm:$0xf] %v1136
        %s1153 = sand.u32 %s252, 1
        %s1154 = scalar_lea.sflag [#allocation4], %s1153
        %s1155 = sand.u32 %s252, 1
        %s1156 = smul.addr %s1155, 32
        %s1157 = scalar_lea.vmem [#allocation10], %s1156
        %s1158 = sand.u32 %s34, 1
        %s1159 = scalar_lea.sflag [#allocation12], %s1158
        %s1160 = sand.u32 %s280, 1
        %s1161 = smul.addr %s1160, 32
        %s1162 = scalar_lea.vmem [#allocation11], %s1161
        %s1163 = sand.u32 %s34, 1
        %s1164 = scalar_lea.sflag [#allocation12], %s1163
        %s1165 = sand.u32 %s308, 1
        %s1166 = smul.addr %s1165, 32
        %s1167 = scalar_lea.vmem [#allocation13], %s1166
        // Predicated region
        $region73: #{tpu_custom_call.1} parent=55 // pred_check
          %p1168 = pneg %p262
        $region74: #{tpu_custom_call.1} parent=55 // pred_check_branch
          %1170 = sbr.rel (%p1168) target = $region76
        $region75: #{tpu_custom_call.1} parent=55 // pred_region
          %s1171 = smul.u32 8, %s39
          %s1173 = ssub.s32 512, 512
          %1174 = vsyncadd %s1154, %s1173
          %s1175 = smul.addr %s38, 8
          %s1176 = sadd.s32 %s1171, %s1175
          %s1177 = smul.addr %s1176, 64
          %s1178 = scalar_lea.hbm %s9, %s1177
          %s1179 = sshll.u32 %s1157, 4
          %s1180 = int_to_ptr.vmem [resolvable:$true] %s1179
          %1185 = dma.vmem_to_hbm [thread:$0]  %s1180, 512, %s1178, %s1154, 64, 64, 4
        $region76: #{tpu_custom_call.1} parent=55 // pred_fallthru
          _
        // Predicated region
        $region77: #{tpu_custom_call.1} parent=55 // pred_check
          %p1186 = pneg %p290
        $region78: #{tpu_custom_call.1} parent=55 // pred_check_branch
          %1188 = sbr.rel (%p1186) target = $region80
        $region79: #{tpu_custom_call.1} parent=55 // pred_region
          %s1189 = smul.u32 8, %s39
          %s1191 = ssub.s32 512, 512
          %1192 = vsyncadd %s1159, %s1191
          %s1193 = smul.addr %s38, 8
          %s1194 = sadd.s32 %s1189, %s1193
          %s1195 = smul.addr %s1194, 64
          %s1196 = scalar_lea.hbm %s10, %s1195
          %s1197 = sshll.u32 %s1162, 4
          %s1198 = int_to_ptr.vmem [resolvable:$true] %s1197
          %1203 = dma.vmem_to_hbm [thread:$0]  %s1198, 512, %s1196, %s1159, 64, 64, 4
        $region80: #{tpu_custom_call.1} parent=55 // pred_fallthru
          _
        // Predicated region
        $region81: #{tpu_custom_call.1} parent=55 // pred_check
          %p1204 = pneg %p318
        $region82: #{tpu_custom_call.1} parent=55 // pred_check_branch
          %1206 = sbr.rel (%p1204) target = $region84
        $region83: #{tpu_custom_call.1} parent=55 // pred_region
          %s1207 = smul.u32 8, %s39
          %s1209 = ssub.s32 512, 512
          %1210 = vsyncadd %s1164, %s1209
          %s1211 = smul.addr %s38, 8
          %s1212 = sadd.s32 %s1207, %s1211
          %s1213 = smul.addr %s1212, 64
          %s1214 = scalar_lea.hbm %s11, %s1213
          %s1215 = sshll.u32 %s1167, 4
          %s1216 = int_to_ptr.vmem [resolvable:$true] %s1215
          %1221 = dma.vmem_to_hbm [thread:$0]  %s1216, 512, %s1214, %s1164, 64, 64, 4
        $region84: #{tpu_custom_call.1} parent=55 // pred_fallthru
          _
      $region56: #{tpu_custom_call.1} parent=5 // pred_fallthru
        _
      %p1222 = scmp.le.s32.totalorder 2, %s29
      // Predicated region
      $region85: #{tpu_custom_call.1} parent=5 // pred_check
        %p1223 = pneg %p1222
      $region86: #{tpu_custom_call.1} parent=5 // pred_check_branch
        %1225 = sbr.rel (%p1223) target = $region88
      $region87: #{tpu_custom_call.1} parent=5 // pred_region
        %s1226 = ssub.s32 %s29, 2
        // Predicated region
        $region89: #{tpu_custom_call.1} parent=87 // pred_check
          %p1227 = pneg %p268
        $region90: #{tpu_custom_call.1} parent=87 // pred_check_branch
          %1229 = sbr.rel (%p1227) target = $region92
        $region91: #{tpu_custom_call.1} parent=87 // pred_region
          %s1230 = sand.u32 %s253, 1
          %s1231 = scalar_lea.sflag [#allocation4], %s1230
          %s1232 = sand.u32 %s253, 1
          %s1233 = smul.addr %s1232, 32
          %s1234 = scalar_lea.vmem [#allocation10], %s1233
          %1235 = dma.done %s1231, 512
        $region92: #{tpu_custom_call.1} parent=87 // pred_fallthru
          _
        // Predicated region
        $region93: #{tpu_custom_call.1} parent=87 // pred_check
          %p1236 = pneg %p296
        $region94: #{tpu_custom_call.1} parent=87 // pred_check_branch
          %1238 = sbr.rel (%p1236) target = $region96
        $region95: #{tpu_custom_call.1} parent=87 // pred_region
          %s1239 = sand.u32 %s35, 1
          %s1240 = scalar_lea.sflag [#allocation12], %s1239
          %s1241 = sand.u32 %s281, 1
          %s1242 = smul.addr %s1241, 32
          %s1243 = scalar_lea.vmem [#allocation11], %s1242
          %1244 = dma.done %s1240, 512
        $region96: #{tpu_custom_call.1} parent=87 // pred_fallthru
          _
        // Predicated region
        $region97: #{tpu_custom_call.1} parent=87 // pred_check
          %p1245 = pneg %p324
        $region98: #{tpu_custom_call.1} parent=87 // pred_check_branch
          %1247 = sbr.rel (%p1245) target = $region100
        $region99: #{tpu_custom_call.1} parent=87 // pred_region
          %s1248 = sand.u32 %s35, 1
          %s1249 = scalar_lea.sflag [#allocation12], %s1248
          %s1250 = sand.u32 %s309, 1
          %s1251 = smul.addr %s1250, 32
          %s1252 = scalar_lea.vmem [#allocation13], %s1251
          %1253 = dma.done %s1249, 512
        $region100: #{tpu_custom_call.1} parent=87 // pred_fallthru
          _
      $region88: #{tpu_custom_call.1} parent=5 // pred_fallthru
        _
    $region6: #{tpu_custom_call.1} parent=1 // loop_footer
      %s33 = sadd.s32 1, %s29
    $region7: #{tpu_custom_call.1} parent=1 // loop_footer_branch
      %28 = sbr.rel target = $region3
    $region8: #{tpu_custom_call.1} parent=1 // loop_exit
      _
    %1254 = vsyncpa [#allocation3], 1
    %s1255 = scalar_lea.sflag [#allocation3], 1
    %1256 = vsyncpa %s1255, 1
    %1257 = vsyncpa [#allocation6], 1
    %1258 = vsyncpa [#allocation9], 1
    %1259 = vsyncpa [#allocation4], 1
    %s1260 = scalar_lea.sflag [#allocation4], 1
    %1261 = vsyncpa %s1260, 1
    %1262 = vsyncpa [#allocation12], 1
    %s1263 = scalar_lea.sflag [#allocation12], 1
    %1264 = vsyncpa %s1263, 1

// kernel: tpu_custom_call.1
$region0: #{tpu_custom_call.1}
  #allocation0 [shape = 'u32[]', space=smem, size = 0x4, offset = 0x4, fixed_abs, tag = 'smem constant byte address 0x4 - core index']
  #allocation1 [shape = 'u32[144,128]{1,0:T(1,128)}', space=vmem, size = 0x12000, scoped, tag = 'internal scratch']
  %s0 = inlined_call_operand.hbm [shape: f32[2,64,128], index: 0, kind: input, shape index: {}]
  %s1 = inlined_call_operand.vmem [shape: f32[1,128], index: 1, kind: input, shape index: {}]
  %s2 = inlined_call_operand.vmem [shape: f32[1,128], index: 2, kind: input, shape index: {}]
  %s3 = inlined_call_operand.hbm [shape: bf16[128,128], index: 3, kind: input, shape index: {}]
  %s4 = inlined_call_operand.vmem [shape: f32[1,128], index: 4, kind: input, shape index: {}]
  %s5 = inlined_call_operand.hbm [shape: bf16[128,128], index: 5, kind: input, shape index: {}]
  %s6 = inlined_call_operand.vmem [shape: f32[1,128], index: 6, kind: input, shape index: {}]
  %s7 = inlined_call_operand.hbm [shape: bf16[128,128], index: 7, kind: input, shape index: {}]
  %s8 = inlined_call_operand.vmem [shape: f32[1,128], index: 8, kind: input, shape index: {}]
  %s9 = inlined_call_operand.hbm [shape: bf16[2,64,128], index: 9, kind: output, shape index: {0}]
  %s10 = inlined_call_operand.hbm [shape: bf16[2,64,128], index: 10, kind: output, shape index: {1}]
  %s11 = inlined_call_operand.hbm [shape: bf16[2,64,128], index: 11, kind: output, shape index: {2}]
  %12 = xla_tuple %s9, %s10, %s11
  %s13 = sld [smem:[#allocation0]]
  $region101: #{tpu_custom_call.1} parent=0
    _
  %s15 = ssub.s32 1, %s13
  %s16 = scalar_select 0, %s15, %s13
  $region1: #{tpu_custom_call.1} parent=0
    #allocation2 [shape = 'u8[65536]{0}', space=vmem, size = 0x10000, scoped, tag = 'input window, operand 0']
    #allocation3 [shape = 's32[2]{0}', space=sflag, size = 0x8, scoped, tag = 'scoped memory for tpu_custom_call.1']
    #allocation4 [shape = 's32[2]{0}', space=sflag, size = 0x8, scoped, tag = 'scoped memory for tpu_custom_call.1']
    #allocation5 [shape = 'u8[32768]{0}', space=vmem, size = 0x8000, scoped, tag = 'input window, operand 3, single buffered']
    #allocation6 [shape = 's32[1]{0}', space=sflag, size = 0x4, scoped, tag = 'scoped memory for tpu_custom_call.1']
    #allocation7 [shape = 'u8[32768]{0}', space=vmem, size = 0x8000, scoped, tag = 'input window, operand 5, single buffered']
    #allocation8 [shape = 'u8[32768]{0}', space=vmem, size = 0x8000, scoped, tag = 'input window, operand 7, single buffered']
    #allocation9 [shape = 's32[1]{0}', space=sflag, size = 0x4, scoped, tag = 'scoped memory for tpu_custom_call.1']
    #allocation10 [shape = 'u8[32768]{0}', space=vmem, size = 0x8000, scoped, tag = 'output window, operand 0']
    #allocation11 [shape = 'u8[32768]{0}', space=vmem, size = 0x8000, scoped, tag = 'output window, operand 1']
    #allocation12 [shape = 's32[2]{0}', space=sflag, size = 0x8, scoped, tag = 'scoped memory for tpu_custom_call.1']
    #allocation13 [shape = 'u8[32768]{0}', space=vmem, size = 0x8000, scoped, tag = 'output window, operand 2']
    %17 = vsyncpa [#allocation3], 0
    %s18 = scalar_lea.sflag [#allocation3], 1
    %19 = vsyncpa %s18, 0
    %20 = vsyncpa [#allocation6], 0
    %21 = vsyncpa [#allocation9], 0
    %22 = vsyncpa [#allocation4], 0
    %s23 = scalar_lea.sflag [#allocation4], 1
    %24 = vsyncpa %s23, 0
    %25 = vsyncpa [#allocation12], 0
    %s26 = scalar_lea.sflag [#allocation12], 1
    %27 = vsyncpa %s26, 0
    loop: start=0, step=1, limit=4
    $region2: #{tpu_custom_call.1} parent=1 // loop_pre_header
      _
    $region3: #{tpu_custom_call.1} parent=1 // loop_header
      %s29 = sphi 0, %s33
      %p30 = scmp.ge.s32.totalorder %s29, 4
      %s36 = sphi 0, %s48
      %s37 = sphi 0, %s44
      %s38 = sphi 0, %s36
      %s39 = sphi 0, %s37
      %s40 = sphi 0, %s38
      %s41 = sphi 0, %s39
      %s53 = sphi 0, %s55
      %s56 = sphi 0, %s53
      %s57 = sphi 0, %s56
      %s73 = sphi 0, %s57
      %s77 = sphi 0, %s77
      %s79 = sphi 0, %s77
      %s80 = sphi 0, %s79
      %s94 = sphi 0, %s80
      %s98 = sphi 0, %s98
      %s100 = sphi 0, %s98
      %s101 = sphi 0, %s100
      %s115 = sphi 0, %s101
      %s119 = sphi 0, %s119
      %s121 = sphi 0, %s119
      %s122 = sphi 0, %s121
      %s136 = sphi 0, %s122
      %s140 = sphi 0, %s140
      %s142 = sphi 0, %s140
      %s143 = sphi 0, %s142
      %s157 = sphi 0, %s143
      %s161 = sphi 0, %s161
      %s163 = sphi 0, %s161
      %s164 = sphi 0, %s163
      %s178 = sphi 0, %s164
      %s182 = sphi 0, %s182
      %s184 = sphi 0, %s182
      %s185 = sphi 0, %s184
      %s199 = sphi 0, %s185
      %s203 = sphi 0, %s203
      %s205 = sphi 0, %s203
      %s206 = sphi 0, %s205
      %s220 = sphi 0, %s206
      %s224 = sphi 0, %s224
      %s226 = sphi 0, %s224
      %s227 = sphi 0, %s226
      %s241 = sphi 0, %s227
      %s249 = sphi 0, %s251
      %s252 = sphi 0, %s249
      %s253 = sphi 0, %s252
      %s269 = sphi 0, %s253
      %s277 = sphi 0, %s279
      %s280 = sphi 0, %s277
      %s281 = sphi 0, %s280
      %s297 = sphi 0, %s281
      %s305 = sphi 0, %s307
      %s308 = sphi 0, %s305
      %s309 = sphi 0, %s308
      %s325 = sphi 0, %s309
    $region4: #{tpu_custom_call.1} parent=1 // loop_header_branch
      %32 = sbr.rel (%p30) target = $region8
    $region5: #{tpu_custom_call.1} parent=1 // loop_body
      %s34 = ssub.s32 %s29, 1
      %s35 = ssub.s32 %s29, 2
      %s42 = sadd.s32 1, %s37
      %p43 = scmp.ge.s32.totalorder %s42, 1
      %s44 = scalar_select %p43, 0, %s42
      %s45 = sadd.s32 1, %s36
      %s46 = scalar_select %p43, %s45, %s36
      %p47 = scmp.ge.s32.totalorder %s46, 2
      %s48 = scalar_select %p47, 0, %s46
      %s49 = ssub.s32 %s36, %s48
      %s50 = ssub.s32 %s37, %s44
      %s51 = sor.u32 %s49, %s50
      %p52 = scmp.eq.s32.totalorder %s51, 0
      %s54 = sadd.s32 %s53, 1
      %s55 = scalar_select %p52, %s53, %s54
      %p58 = pneg %p52
      %p59 = scmp.eq.s32.totalorder %s29, 1
      %p60 = por %p58, %p59
      %p61 = scmp.ne.s32.totalorder %s53, %s56
      %p62 = scmp.eq.s32.totalorder %s29, 0
      %p63 = por %p61, %p62
      %p64 = scmp.ne.s32.totalorder %s53, %s56
      %p65 = scmp.eq.s32.totalorder %s34, 1
      %p66 = por %p64, %p65
      %p67 = scmp.ne.s32.totalorder %s56, %s57
      %p68 = scmp.eq.s32.totalorder %s34, 0
      %p69 = por %p67, %p68
      %p70 = scmp.ne.s32.totalorder %s56, %s57
      %p71 = scmp.eq.s32.totalorder %s35, 1
      %p72 = por %p70, %p71
      %p74 = scmp.ne.s32.totalorder %s57, %s73
      %p75 = scmp.eq.s32.totalorder %s35, 0
      %p76 = por %p74, %p75
      %s78 = sadd.s32 %s77, 1
      %p81 = scmp.eq.s32.totalorder %s29, 1
      %p82 = scmp.ne.s32.totalorder %s77, %s79
      %p83 = scmp.eq.s32.totalorder %s29, 0
      %p84 = por %p82, %p83
      %p85 = scmp.ne.s32.totalorder %s77, %s79
      %p86 = scmp.eq.s32.totalorder %s34, 1
      %p87 = por %p85, %p86
      %p88 = scmp.ne.s32.totalorder %s79, %s80
      %p89 = scmp.eq.s32.totalorder %s34, 0
      %p90 = por %p88, %p89
      %p91 = scmp.ne.s32.totalorder %s79, %s80
      %p92 = scmp.eq.s32.totalorder %s35, 1
      %p93 = por %p91, %p92
      %p95 = scmp.ne.s32.totalorder %s80, %s94
      %p96 = scmp.eq.s32.totalorder %s35, 0
      %p97 = por %p95, %p96
      %s99 = sadd.s32 %s98, 1
      %p102 = scmp.eq.s32.totalorder %s29, 1
      %p103 = scmp.ne.s32.totalorder %s98, %s100
      %p104 = scmp.eq.s32.totalorder %s29, 0
      %p105 = por %p103, %p104
      %p106 = scmp.ne.s32.totalorder %s98, %s100
      %p107 = scmp.eq.s32.totalorder %s34, 1
      %p108 = por %p106, %p107
      %p109 = scmp.ne.s32.totalorder %s100, %s101
      %p110 = scmp.eq.s32.totalorder %s34, 0
      %p111 = por %p109, %p110
      %p112 = scmp.ne.s32.totalorder %s100, %s101
      %p113 = scmp.eq.s32.totalorder %s35, 1
      %p114 = por %p112, %p113
      %p116 = scmp.ne.s32.totalorder %s101, %s115
      %p117 = scmp.eq.s32.totalorder %s35, 0
      %p118 = por %p116, %p117
      %s120 = sadd.s32 %s119, 1
      %p123 = scmp.eq.s32.totalorder %s29, 1
      %p124 = scmp.ne.s32.totalorder %s119, %s121
      %p125 = scmp.eq.s32.totalorder %s29, 0
      %p126 = por %p124, %p125
      %p127 = scmp.ne.s32.totalorder %s119, %s121
      %p128 = scmp.eq.s32.totalorder %s34, 1
      %p129 = por %p127, %p128
      %p130 = scmp.ne.s32.totalorder %s121, %s122
      %p131 = scmp.eq.s32.totalorder %s34, 0
      %p132 = por %p130, %p131
      %p133 = scmp.ne.s32.totalorder %s121, %s122
      %p134 = scmp.eq.s32.totalorder %s35, 1
      %p135 = por %p133, %p134
      %p137 = scmp.ne.s32.totalorder %s122, %s136
      %p138 = scmp.eq.s32.totalorder %s35, 0
      %p139 = por %p137, %p138
      %s141 = sadd.s32 %s140, 1
      %p144 = scmp.eq.s32.totalorder %s29, 1
      %p145 = scmp.ne.s32.totalorder %s140, %s142
      %p146 = scmp.eq.s32.totalorder %s29, 0
      %p147 = por %p145, %p146
      %p148 = scmp.ne.s32.totalorder %s140, %s142
      %p149 = scmp.eq.s32.totalorder %s34, 1
      %p150 = por %p148, %p149
      %p151 = scmp.ne.s32.totalorder %s142, %s143
      %p152 = scmp.eq.s32.totalorder %s34, 0
      %p153 = por %p151, %p152
      %p154 = scmp.ne.s32.totalorder %s142, %s143
      %p155 = scmp.eq.s32.totalorder %s35, 1
      %p156 = por %p154, %p155
      %p158 = scmp.ne.s32.totalorder %s143, %s157
      %p159 = scmp.eq.s32.totalorder %s35, 0
      %p160 = por %p158, %p159
      %s162 = sadd.s32 %s161, 1
      %p165 = scmp.eq.s32.totalorder %s29, 1
      %p166 = scmp.ne.s32.totalorder %s161, %s163
      %p167 = scmp.eq.s32.totalorder %s29, 0
      %p168 = por %p166, %p167
      %p169 = scmp.ne.s32.totalorder %s161, %s163
      %p170 = scmp.eq.s32.totalorder %s34, 1
      %p171 = por %p169, %p170
      %p172 = scmp.ne.s32.totalorder %s163, %s164
      %p173 = scmp.eq.s32.totalorder %s34, 0
      %p174 = por %p172, %p173
      %p175 = scmp.ne.s32.totalorder %s163, %s164
      %p176 = scmp.eq.s32.totalorder %s35, 1
      %p177 = por %p175, %p176
      %p179 = scmp.ne.s32.totalorder %s164, %s178
      %p180 = scmp.eq.s32.totalorder %s35, 0
      %p181 = por %p179, %p180
      %s183 = sadd.s32 %s182, 1
      %p186 = scmp.eq.s32.totalorder %s29, 1
      %p187 = scmp.ne.s32.totalorder %s182, %s184
      %p188 = scmp.eq.s32.totalorder %s29, 0
      %p189 = por %p187, %p188
      %p190 = scmp.ne.s32.totalorder %s182, %s184
      %p191 = scmp.eq.s32.totalorder %s34, 1
      %p192 = por %p190, %p191
      %p193 = scmp.ne.s32.totalorder %s184, %s185
      %p194 = scmp.eq.s32.totalorder %s34, 0
      %p195 = por %p193, %p194
      %p196 = scmp.ne.s32.totalorder %s184, %s185
      %p197 = scmp.eq.s32.totalorder %s35, 1
      %p198 = por %p196, %p197
      %p200 = scmp.ne.s32.totalorder %s185, %s199
      %p201 = scmp.eq.s32.totalorder %s35, 0
      %p202 = por %p200, %p201
      %s204 = sadd.s32 %s203, 1
      %p207 = scmp.eq.s32.totalorder %s29, 1
      %p208 = scmp.ne.s32.totalorder %s203, %s205
      %p209 = scmp.eq.s32.totalorder %s29, 0
      %p210 = por %p208, %p209
      %p211 = scmp.ne.s32.totalorder %s203, %s205
      %p212 = scmp.eq.s32.totalorder %s34, 1
      %p213 = por %p211, %p212
      %p214 = scmp.ne.s32.totalorder %s205, %s206
      %p215 = scmp.eq.s32.totalorder %s34, 0
      %p216 = por %p214, %p215
      %p217 = scmp.ne.s32.totalorder %s205, %s206
      %p218 = scmp.eq.s32.totalorder %s35, 1
      %p219 = por %p217, %p218
      %p221 = scmp.ne.s32.totalorder %s206, %s220
      %p222 = scmp.eq.s32.totalorder %s35, 0
      %p223 = por %p221, %p222
      %s225 = sadd.s32 %s224, 1
      %p228 = scmp.eq.s32.totalorder %s29, 1
      %p229 = scmp.ne.s32.totalorder %s224, %s226
      %p230 = scmp.eq.s32.totalorder %s29, 0
      %p231 = por %p229, %p230
      %p232 = scmp.ne.s32.totalorder %s224, %s226
      %p233 = scmp.eq.s32.totalorder %s34, 1
      %p234 = por %p232, %p233
      %p235 = scmp.ne.s32.totalorder %s226, %s227
      %p236 = scmp.eq.s32.totalorder %s34, 0
      %p237 = por %p235, %p236
      %p238 = scmp.ne.s32.totalorder %s226, %s227
      %p239 = scmp.eq.s32.totalorder %s35, 1
      %p240 = por %p238, %p239
      %p242 = scmp.ne.s32.totalorder %s227, %s241
      %p243 = scmp.eq.s32.totalorder %s35, 0
      %p244 = por %p242, %p243
      %s245 = ssub.s32 %s36, %s48
      %s246 = ssub.s32 %s37, %s44
      %s247 = sor.u32 %s245, %s246
      %p248 = scmp.eq.s32.totalorder %s247, 0
      %s250 = sadd.s32 %s249, 1
      %s251 = scalar_select %p248, %s249, %s250
      %p254 = pneg %p248
      %p255 = scmp.eq.s32.totalorder %s29, 1
      %p256 = por %p254, %p255
      %p257 = scmp.ne.s32.totalorder %s249, %s252
      %p258 = scmp.eq.s32.totalorder %s29, 0
      %p259 = por %p257, %p258
      %p260 = scmp.ne.s32.totalorder %s249, %s252
      %p261 = scmp.eq.s32.totalorder %s34, 1
      %p262 = por %p260, %p261
      %p263 = scmp.ne.s32.totalorder %s252, %s253
      %p264 = scmp.eq.s32.totalorder %s34, 0
      %p265 = por %p263, %p264
      %p266 = scmp.ne.s32.totalorder %s252, %s253
      %p267 = scmp.eq.s32.totalorder %s35, 1
      %p268 = por %p266, %p267
      %p270 = scmp.ne.s32.totalorder %s253, %s269
      %p271 = scmp.eq.s32.totalorder %s35, 0
      %p272 = por %p270, %p271
      %s273 = ssub.s32 %s36, %s48
      %s274 = ssub.s32 %s37, %s44
      %s275 = sor.u32 %s273, %s274
      %p276 = scmp.eq.s32.totalorder %s275, 0
      %s278 = sadd.s32 %s277, 1
      %s279 = scalar_select %p276, %s277, %s278
      %p282 = pneg %p276
      %p283 = scmp.eq.s32.totalorder %s29, 1
      %p284 = por %p282, %p283
      %p285 = scmp.ne.s32.totalorder %s277, %s280
      %p286 = scmp.eq.s32.totalorder %s29, 0
      %p287 = por %p285, %p286
      %p288 = scmp.ne.s32.totalorder %s277, %s280
      %p289 = scmp.eq.s32.totalorder %s34, 1
      %p290 = por %p288, %p289
      %p291 = scmp.ne.s32.totalorder %s280, %s281
      %p292 = scmp.eq.s32.totalorder %s34, 0
      %p293 = por %p291, %p292
      %p294 = scmp.ne.s32.totalorder %s280, %s281
      %p295 = scmp.eq.s32.totalorder %s35, 1
      %p296 = por %p294, %p295
      %p298 = scmp.ne.s32.totalorder %s281, %s297
      %p299 = scmp.eq.s32.totalorder %s35, 0
      %p300 = por %p298, %p299
      %s301 = ssub.s32 %s36, %s48
      %s302 = ssub.s32 %s37, %s44
      %s303 = sor.u32 %s301, %s302
      %p304 = scmp.eq.s32.totalorder %s303, 0
      %s306 = sadd.s32 %s305, 1
      %s307 = scalar_select %p304, %s305, %s306
      %p310 = pneg %p304
      %p311 = scmp.eq.s32.totalorder %s29, 1
      %p312 = por %p310, %p311
      %p313 = scmp.ne.s32.totalorder %s305, %s308
      %p314 = scmp.eq.s32.totalorder %s29, 0
      %p315 = por %p313, %p314
      %p316 = scmp.ne.s32.totalorder %s305, %s308
      %p317 = scmp.eq.s32.totalorder %s34, 1
      %p318 = por %p316, %p317
      %p319 = scmp.ne.s32.totalorder %s308, %s309
      %p320 = scmp.eq.s32.totalorder %s34, 0
      %p321 = por %p319, %p320
      %p322 = scmp.ne.s32.totalorder %s308, %s309
      %p323 = scmp.eq.s32.totalorder %s35, 1
      %p324 = por %p322, %p323
      %p326 = scmp.ne.s32.totalorder %s309, %s325
      %p327 = scmp.eq.s32.totalorder %s35, 0
      %p328 = por %p326, %p327
      %p329 = scmp.le.s32.totalorder 1, %s29
      %p330 = scmp.lt.s32.totalorder %s29, 3
      %p331 = pnand %p329, %p330
      %p332 = pneg %p331
      // Predicated region
      $region9: #{tpu_custom_call.1} parent=5 // pred_check
        _
      $region10: #{tpu_custom_call.1} parent=5 // pred_check_branch
        %334 = sbr.rel (%p331) target = $region12
      $region11: #{tpu_custom_call.1} parent=5 // pred_region
        %s335 = ssub.s32 %s29, 1
        // Predicated region
        $region13: #{tpu_custom_call.1} parent=11 // pred_check
          %p336 = pneg %p90
        $region14: #{tpu_custom_call.1} parent=11 // pred_check_branch
          %338 = sbr.rel (%p336) target = $region16
        $region15: #{tpu_custom_call.1} parent=11 // pred_region
          _
        $region16: #{tpu_custom_call.1} parent=11 // pred_fallthru
          _
        // Predicated region
        $region17: #{tpu_custom_call.1} parent=11 // pred_check
          %p339 = pneg %p111
        $region18: #{tpu_custom_call.1} parent=11 // pred_check_branch
          %341 = sbr.rel (%p339) target = $region20
        $region19: #{tpu_custom_call.1} parent=11 // pred_region
          _
        $region20: #{tpu_custom_call.1} parent=11 // pred_fallthru
          _
        // Predicated region
        $region21: #{tpu_custom_call.1} parent=11 // pred_check
          %p342 = pneg %p132
        $region22: #{tpu_custom_call.1} parent=11 // pred_check_branch
          %344 = sbr.rel (%p342) target = $region24
        $region23: #{tpu_custom_call.1} parent=11 // pred_region
          %s346 = ssub.s32 1024, 1024
          %347 = vsyncadd [#allocation6], %s346
          %s348 = sshll.u32 [#allocation5], 4
          %s349 = int_to_ptr.vmem [resolvable:$true] %s348
          %354 = dma.hbm_to_vmem [thread:$0]  %s3, 1024, %s349, [#allocation6], 64, 64, 4
        $region24: #{tpu_custom_call.1} parent=11 // pred_fallthru
          _
        // Predicated region
        $region25: #{tpu_custom_call.1} parent=11 // pred_check
          %p355 = pneg %p153
        $region26: #{tpu_custom_call.1} parent=11 // pred_check_branch
          %357 = sbr.rel (%p355) target = $region28
        $region27: #{tpu_custom_call.1} parent=11 // pred_region
          _
        $region28: #{tpu_custom_call.1} parent=11 // pred_fallthru
          _
        // Predicated region
        $region29: #{tpu_custom_call.1} parent=11 // pred_check
          %p358 = pneg %p174
        $region30: #{tpu_custom_call.1} parent=11 // pred_check_branch
          %360 = sbr.rel (%p358) target = $region32
        $region31: #{tpu_custom_call.1} parent=11 // pred_region
          %s362 = ssub.s32 1024, 1024
          %363 = vsyncadd [#allocation6], %s362
          %s364 = sshll.u32 [#allocation7], 4
          %s365 = int_to_ptr.vmem [resolvable:$true] %s364
          %370 = dma.hbm_to_vmem [thread:$0]  %s5, 1024, %s365, [#allocation6], 64, 64, 4
        $region32: #{tpu_custom_call.1} parent=11 // pred_fallthru
          _
        // Predicated region
        $region33: #{tpu_custom_call.1} parent=11 // pred_check
          %p371 = pneg %p195
        $region34: #{tpu_custom_call.1} parent=11 // pred_check_branch
          %373 = sbr.rel (%p371) target = $region36
        $region35: #{tpu_custom_call.1} parent=11 // pred_region
          _
        $region36: #{tpu_custom_call.1} parent=11 // pred_fallthru
          _
        // Predicated region
        $region37: #{tpu_custom_call.1} parent=11 // pred_check
          %p374 = pneg %p216
        $region38: #{tpu_custom_call.1} parent=11 // pred_check_branch
          %376 = sbr.rel (%p374) target = $region40
        $region39: #{tpu_custom_call.1} parent=11 // pred_region
          %s378 = ssub.s32 1024, 1024
          %379 = vsyncadd [#allocation9], %s378
          %s380 = sshll.u32 [#allocation8], 4
          %s381 = int_to_ptr.vmem [resolvable:$true] %s380
          %386 = dma.hbm_to_vmem [thread:$0]  %s7, 1024, %s381, [#allocation9], 64, 64, 4
        $region40: #{tpu_custom_call.1} parent=11 // pred_fallthru
          _
        // Predicated region
        $region41: #{tpu_custom_call.1} parent=11 // pred_check
          %p387 = pneg %p237
        $region42: #{tpu_custom_call.1} parent=11 // pred_check_branch
          %389 = sbr.rel (%p387) target = $region44
        $region43: #{tpu_custom_call.1} parent=11 // pred_region
          _
        $region44: #{tpu_custom_call.1} parent=11 // pred_fallthru
          _
      $region12: #{tpu_custom_call.1} parent=5 // pred_fallthru
        _
      %p390 = scmp.lt.s32.totalorder %s29, 2
      // Predicated region
      $region45: #{tpu_custom_call.1} parent=5 // pred_check
        %p391 = pneg %p390
      $region46: #{tpu_custom_call.1} parent=5 // pred_check_branch
        %393 = sbr.rel (%p391) target = $region48
      $region47: #{tpu_custom_call.1} parent=5 // pred_region
        // Predicated region
        $region49: #{tpu_custom_call.1} parent=47 // pred_check
          %p394 = pneg %p63
        $region50: #{tpu_custom_call.1} parent=47 // pred_check_branch
          %396 = sbr.rel (%p394) target = $region52
        $region51: #{tpu_custom_call.1} parent=47 // pred_region
          %s397 = sand.u32 %s53, 1
          %s398 = scalar_lea.sflag [#allocation3], %s397
          %s399 = sand.u32 %s53, 1
          %s400 = smul.addr %s399, 64
          %s401 = scalar_lea.vmem [#allocation2], %s400
          %s402 = smul.u32 8, %s37
          %s404 = ssub.s32 1024, 1024
          %405 = vsyncadd %s398, %s404
          %s406 = smul.addr %s36, 8
          %s407 = sadd.s32 %s402, %s406
          %s408 = smul.addr %s407, 128
          %s409 = scalar_lea.hbm %s0, %s408
          %s410 = sshll.u32 %s401, 4
          %s411 = int_to_ptr.vmem [resolvable:$true] %s410
          %416 = dma.hbm_to_vmem [thread:$0]  %s409, 1024, %s411, %s398, 128, 128, 8
        $region52: #{tpu_custom_call.1} parent=47 // pred_fallthru
          _
      $region48: #{tpu_custom_call.1} parent=5 // pred_fallthru
        _
      %p417 = scmp.le.s32.totalorder 1, %s29
      %p418 = scmp.lt.s32.totalorder %s29, 3
      %p419 = pnand %p417, %p418
      %p420 = pneg %p419
      // Predicated region
      $region53: #{tpu_custom_call.1} parent=5 // pred_check
        _
      $region54: #{tpu_custom_call.1} parent=5 // pred_check_branch
        %422 = sbr.rel (%p419) target = $region56
      $region55: #{tpu_custom_call.1} parent=5 // pred_region
        %s423 = ssub.s32 %s29, 1
        %s424 = sand.u32 %s56, 1
        %s425 = scalar_lea.sflag [#allocation3], %s424
        %s426 = sand.u32 %s56, 1
        %s427 = smul.addr %s426, 64
        %s428 = scalar_lea.vmem [#allocation2], %s427
        // Predicated region
        $region57: #{tpu_custom_call.1} parent=55 // pred_check
          %p429 = pneg %p69
        $region58: #{tpu_custom_call.1} parent=55 // pred_check_branch
          %431 = sbr.rel (%p429) target = $region60
        $region59: #{tpu_custom_call.1} parent=55 // pred_region
          %432 = dma.done %s425, 1024
        $region60: #{tpu_custom_call.1} parent=55 // pred_fallthru
          _
        // Predicated region
        $region61: #{tpu_custom_call.1} parent=55 // pred_check
          %p433 = pneg %p132
        $region62: #{tpu_custom_call.1} parent=55 // pred_check_branch
          %435 = sbr.rel (%p433) target = $region64
        $region63: #{tpu_custom_call.1} parent=55 // pred_region
          %436 = dma.done [#allocation6], 1024
        $region64: #{tpu_custom_call.1} parent=55 // pred_fallthru
          _
        // Predicated region
        $region65: #{tpu_custom_call.1} parent=55 // pred_check
          %p437 = pneg %p174
        $region66: #{tpu_custom_call.1} parent=55 // pred_check_branch
          %439 = sbr.rel (%p437) target = $region68
        $region67: #{tpu_custom_call.1} parent=55 // pred_region
          %440 = dma.done [#allocation6], 1024
        $region68: #{tpu_custom_call.1} parent=55 // pred_fallthru
          _
        // Predicated region
        $region69: #{tpu_custom_call.1} parent=55 // pred_check
          %p441 = pneg %p216
        $region70: #{tpu_custom_call.1} parent=55 // pred_check_branch
          %443 = sbr.rel (%p441) target = $region72
        $region71: #{tpu_custom_call.1} parent=55 // pred_region
          %444 = dma.done [#allocation9], 1024
        $region72: #{tpu_custom_call.1} parent=55 // pred_fallthru
          _
        %s445 = sand.u32 %s56, 1
        %s446 = scalar_lea.sflag [#allocation3], %s445
        %s447 = sand.u32 %s56, 1
        %s448 = smul.addr %s447, 64
        %s449 = scalar_lea.vmem [#allocation2], %s448
        %p450 = pneg %p69
        %p451 = pneg %p66
        %p452 = pneg %p90
        %p453 = pneg %p87
        %p454 = pneg %p111
        %p455 = pneg %p108
        %p456 = pneg %p132
        %p457 = pneg %p129
        %p458 = pneg %p153
        %p459 = pneg %p150
        %p460 = pneg %p174
        %p461 = pneg %p171
        %p462 = pneg %p195
        %p463 = pneg %p192
        %p464 = pneg %p216
        %p465 = pneg %p213
        %p466 = pneg %p237
        %p467 = pneg %p234
        %p468 = pneg %p265
        %p469 = pneg %p262
        %s470 = sand.u32 %s252, 1
        %s471 = scalar_lea.sflag [#allocation4], %s470
        %s472 = sand.u32 %s252, 1
        %s473 = smul.addr %s472, 32
        %s474 = scalar_lea.vmem [#allocation10], %s473
        %p475 = pneg %p293
        %p476 = pneg %p290
        %s477 = sand.u32 %s34, 1
        %s478 = scalar_lea.sflag [#allocation12], %s477
        %s479 = sand.u32 %s280, 1
        %s480 = smul.addr %s479, 32
        %s481 = scalar_lea.vmem [#allocation11], %s480
        %p482 = pneg %p321
        %p483 = pneg %p318
        %s484 = sand.u32 %s34, 1
        %s485 = scalar_lea.sflag [#allocation12], %s484
        %s486 = sand.u32 %s308, 1
        %s487 = smul.addr %s486, 32
        %s488 = scalar_lea.vmem [#allocation13], %s487
        %s489 = smul.u32 8, %s39
        %s490 = smul.u32 8, %s39
        %s491 = smul.u32 8, %s39
        %s492 = smul.u32 8, %s39
        %v494 = vld [vmem:[%s428] sm:$0xff]
        %v495 = vld [vmem:[%s428 + $0x8] sm:$0xff]
        %v496 = vld [vmem:[%s428 + $0x10] sm:$0xff]
        %v497 = vld [vmem:[%s428 + $0x18] sm:$0xff]
        %v498 = vld [vmem:[%s428 + $0x20] sm:$0xff]
        %v499 = vld [vmem:[%s428 + $0x28] sm:$0xff]
        %v500 = vld [vmem:[%s428 + $0x30] sm:$0xff]
        %v501 = vld [vmem:[%s428 + $0x38] sm:$0xff]
        %v502 = vld [vmem:[%s1] sm:$0x1]
        %v503 = vld [vmem:[%s2] sm:$0x1]
        %504 = vadd.xlane.f32.xlu0 %v494
        %v505 = vpop.xlane.xlu0 %504
        %506 = vadd.xlane.f32.xlu0 %v495
        %v507 = vpop.xlane.xlu0 %506
        %508 = vadd.xlane.f32.xlu0 %v496
        %v509 = vpop.xlane.xlu0 %508
        %510 = vadd.xlane.f32.xlu0 %v497
        %v511 = vpop.xlane.xlu0 %510
        %512 = vadd.xlane.f32.xlu0 %v498
        %v513 = vpop.xlane.xlu0 %512
        %514 = vadd.xlane.f32.xlu0 %v499
        %v515 = vpop.xlane.xlu0 %514
        %516 = vadd.xlane.f32.xlu0 %v500
        %v517 = vpop.xlane.xlu0 %516
        %518 = vadd.xlane.f32.xlu0 %v501
        %v519 = vpop.xlane.xlu0 %518
        %v520 = vrcp.pop 128.0
        %v521 = vmul.f32 %v505, %v520
        %v522 = vmul.f32 %v507, %v520
        %v523 = vmul.f32 %v509, %v520
        %v524 = vmul.f32 %v511, %v520
        %v525 = vmul.f32 %v513, %v520
        %v526 = vmul.f32 %v515, %v520
        %v527 = vmul.f32 %v517, %v520
        %v528 = vmul.f32 %v519, %v520
        %v529 = vsub.f32 %v494, %v521
        %v530 = vsub.f32 %v495, %v522
        %v531 = vsub.f32 %v496, %v523
        %v532 = vsub.f32 %v497, %v524
        %v533 = vsub.f32 %v498, %v525
        %v534 = vsub.f32 %v499, %v526
        %v535 = vsub.f32 %v500, %v527
        %v536 = vsub.f32 %v501, %v528
        %v537 = vmul.f32 %v529, %v529
        %v538 = vmul.f32 %v530, %v530
        %v539 = vmul.f32 %v531, %v531
        %v540 = vmul.f32 %v532, %v532
        %v541 = vmul.f32 %v533, %v533
        %v542 = vmul.f32 %v534, %v534
        %v543 = vmul.f32 %v535, %v535
        %v544 = vmul.f32 %v536, %v536
        %545 = vadd.xlane.f32.xlu0 %v537
        %v546 = vpop.xlane.xlu0 %545
        %547 = vadd.xlane.f32.xlu0 %v538
        %v548 = vpop.xlane.xlu0 %547
        %549 = vadd.xlane.f32.xlu0 %v539
        %v550 = vpop.xlane.xlu0 %549
        %551 = vadd.xlane.f32.xlu0 %v540
        %v552 = vpop.xlane.xlu0 %551
        %553 = vadd.xlane.f32.xlu0 %v541
        %v554 = vpop.xlane.xlu0 %553
        %555 = vadd.xlane.f32.xlu0 %v542
        %v556 = vpop.xlane.xlu0 %555
        %557 = vadd.xlane.f32.xlu0 %v543
        %v558 = vpop.xlane.xlu0 %557
        %559 = vadd.xlane.f32.xlu0 %v544
        %v560 = vpop.xlane.xlu0 %559
        %v561 = vmul.f32 %v546, %v520
        %v562 = vmul.f32 %v548, %v520
        %v563 = vmul.f32 %v550, %v520
        %v564 = vmul.f32 %v552, %v520
        %v565 = vmul.f32 %v554, %v520
        %v566 = vmul.f32 %v556, %v520
        %v567 = vmul.f32 %v558, %v520
        %v568 = vmul.f32 %v560, %v520
        %v569 = vadd.f32 %v561, 1e-05
        %v570 = vadd.f32 %v562, 1e-05
        %v571 = vadd.f32 %v563, 1e-05
        %v572 = vadd.f32 %v564, 1e-05
        %v573 = vadd.f32 %v565, 1e-05
        %v574 = vadd.f32 %v566, 1e-05
        %v575 = vadd.f32 %v567, 1e-05
        %v576 = vadd.f32 %v568, 1e-05
        %v577 = vrsqrt.pop %v569
        %v578 = vrsqrt.pop %v570
        %v579 = vrsqrt.pop %v571
        %v580 = vrsqrt.pop %v572
        %v581 = vrsqrt.pop %v573
        %v582 = vrsqrt.pop %v574
        %v583 = vrsqrt.pop %v575
        %v584 = vrsqrt.pop %v576
        %v585 = vmul.f32 %v529, %v577
        %v586 = vmul.f32 %v530, %v578
        %v587 = vmul.f32 %v531, %v579
        %v588 = vmul.f32 %v532, %v580
        %v589 = vmul.f32 %v533, %v581
        %v590 = vmul.f32 %v534, %v582
        %v591 = vmul.f32 %v535, %v583
        %v592 = vmul.f32 %v536, %v584
        %v594 = vlaneseq
        %v595 = vshrl.u32 %v594, 7
        %v596 = vsub.s32 0, %v595
        %v597 = vrot.slane %v502, %v596
        %v599 = vmul.f32 %v585, %v597
        %v600 = vmul.f32 %v586, %v597
        %v601 = vmul.f32 %v587, %v597
        %v602 = vmul.f32 %v588, %v597
        %v603 = vmul.f32 %v589, %v597
        %v604 = vmul.f32 %v590, %v597
        %v605 = vmul.f32 %v591, %v597
        %v606 = vmul.f32 %v592, %v597
        %v608 = vlaneseq
        %v609 = vshrl.u32 %v608, 7
        %v610 = vsub.s32 0, %v609
        %v611 = vrot.slane %v503, %v610
        %v613 = vadd.f32 %v599, %v611
        %v614 = vadd.f32 %v600, %v611
        %v615 = vadd.f32 %v601, %v611
        %v616 = vadd.f32 %v602, %v611
        %v617 = vadd.f32 %v603, %v611
        %v618 = vadd.f32 %v604, %v611
        %v619 = vadd.f32 %v605, %v611
        %v620 = vadd.f32 %v606, %v611
        %v621 = vpack.c.bf16 %v614, %v613
        %v622 = vpack.c.bf16 %v616, %v615
        %v623 = vpack.c.bf16 %v618, %v617
        %v624 = vpack.c.bf16 %v620, %v619
        %v625 = vld [vmem:[#allocation5] sm:$0xf]
        %v626 = vld [vmem:[#allocation5 + $0x4] sm:$0xf]
        %v627 = vld [vmem:[#allocation5 + $0x8] sm:$0xf]
        %v628 = vld [vmem:[#allocation5 + $0xc] sm:$0xf]
        %v629 = vld [vmem:[#allocation5 + $0x10] sm:$0xf]
        %v630 = vld [vmem:[#allocation5 + $0x14] sm:$0xf]
        %v631 = vld [vmem:[#allocation5 + $0x18] sm:$0xf]
        %v632 = vld [vmem:[#allocation5 + $0x1c] sm:$0xf]
        %v633 = vld [vmem:[#allocation5 + $0x20] sm:$0xf]
        %v634 = vld [vmem:[#allocation5 + $0x24] sm:$0xf]
        %v635 = vld [vmem:[#allocation5 + $0x28] sm:$0xf]
        %v636 = vld [vmem:[#allocation5 + $0x2c] sm:$0xf]
        %v637 = vld [vmem:[#allocation5 + $0x30] sm:$0xf]
        %v638 = vld [vmem:[#allocation5 + $0x34] sm:$0xf]
        %v639 = vld [vmem:[#allocation5 + $0x38] sm:$0xf]
        %v640 = vld [vmem:[#allocation5 + $0x3c] sm:$0xf]
        %v641 = vld [vmem:[%s4] sm:$0x1]
        %v643 = vlaneseq
        %v644 = vshrl.u32 %v643, 7
        %v645 = vsub.s32 0, %v644
        %v646 = vrot.slane %v641, %v645
        %v664 = vunpack.c.l.b16 %v625
        %v665 = vunpack.c.l.b16 %v626
        %v666 = vunpack.c.l.b16 %v627
        %v667 = vunpack.c.l.b16 %v628
        %v668 = vunpack.c.l.b16 %v629
        %v669 = vunpack.c.l.b16 %v630
        %v670 = vunpack.c.l.b16 %v631
        %v671 = vunpack.c.l.b16 %v632
        %v672 = vunpack.c.l.b16 %v633
        %v673 = vunpack.c.l.b16 %v634
        %v674 = vunpack.c.l.b16 %v635
        %v675 = vunpack.c.l.b16 %v636
        %v676 = vunpack.c.l.b16 %v637
        %v677 = vunpack.c.l.b16 %v638
        %v678 = vunpack.c.l.b16 %v639
        %v679 = vunpack.c.l.b16 %v640
        %v680 = vpack.c.b16 %v665, %v664
        %v681 = vpack.c.b16 %v667, %v666
        %v682 = vpack.c.b16 %v669, %v668
        %v683 = vpack.c.b16 %v671, %v670
        %v684 = vpack.c.b16 %v673, %v672
        %v685 = vpack.c.b16 %v675, %v674
        %v686 = vpack.c.b16 %v677, %v676
        %v687 = vpack.c.b16 %v679, %v678
        %696 = vmatprep.subr.bf16.mxu0 0
        %697 = vmatpush1.bf16.msra.mxu0 %v680
        %698 = vmatprep.subr.bf16.mxu0 0
        %699 = vmatpush1.bf16.msra.mxu0 %v681
        %700 = vmatprep.subr.bf16.mxu0 0
        %701 = vmatpush1.bf16.msra.mxu0 %v682
        %702 = vmatprep.subr.bf16.mxu0 0
        %703 = vmatpush1.bf16.msra.mxu0 %v683
        %704 = vmatprep.subr.bf16.mxu0 0
        %705 = vmatpush1.bf16.msra.mxu0 %v684
        %706 = vmatprep.subr.bf16.mxu0 0
        %707 = vmatpush1.bf16.msra.mxu0 %v685
        %708 = vmatprep.subr.bf16.mxu0 0
        %709 = vmatpush1.bf16.msra.mxu0 %v686
        %710 = vmatprep.subr.bf16.mxu0 0
        %711 = vmatpush1.bf16.msra.mxu0 %v687
        %712 = vmatprep.subr.bf16.mxu0 0
        %713 = vmatpush1.bf16.msra.mxu0 0
        %714 = vmatprep.subr.bf16.mxu0 0
        %715 = vmatpush1.bf16.msra.mxu0 0
        %716 = vmatprep.subr.bf16.mxu0 0
        %717 = vmatpush1.bf16.msra.mxu0 0
        %718 = vmatprep.subr.bf16.mxu0 0
        %719 = vmatpush1.bf16.msra.mxu0 0
        %720 = vmatprep.subr.bf16.mxu0 0
        %721 = vmatpush1.bf16.msra.mxu0 0
        %722 = vmatprep.subr.bf16.mxu0 0
        %723 = vmatpush1.bf16.msra.mxu0 0
        %724 = vmatprep.subr.bf16.mxu0 0
        %725 = vmatpush1.bf16.msra.mxu0 0
        %726 = vmatprep.subr.bf16.mxu0 0
        %727 = vmatpush1.bf16.msra.mxu0 0
        %728 = vmatprep.mubr.bf16.mxu0 0
        %729 = vmatmul.mubr.bf16.gmra.mrb[0].mxu0 %v621
        %v730 = vpop.f32.mrb[0].mxu0
        %v731 = vadd.f32 %v646, %v730
        %v732 = vpop.f32.mrb[0].mxu0
        %v733 = vpop.f32.mrb[0].mxu0
        %v734 = vadd.f32 %v646, %v733
        %v735 = vpop.f32.mrb[0].mxu0
        %736 = vmatprep.mubr.bf16.mxu0 0
        %737 = vmatmul.mubr.bf16.gmra.mrb[0].mxu0 %v622
        %v738 = vpop.f32.mrb[0].mxu0
        %v739 = vadd.f32 %v646, %v738
        %v740 = vpop.f32.mrb[0].mxu0
        %v741 = vpop.f32.mrb[0].mxu0
        %v742 = vadd.f32 %v646, %v741
        %v743 = vpop.f32.mrb[0].mxu0
        %744 = vmatprep.mubr.bf16.mxu0 0
        %745 = vmatmul.mubr.bf16.gmra.mrb[0].mxu0 %v623
        %v746 = vpop.f32.mrb[0].mxu0
        %v747 = vadd.f32 %v646, %v746
        %v748 = vpop.f32.mrb[0].mxu0
        %v749 = vpop.f32.mrb[0].mxu0
        %v750 = vadd.f32 %v646, %v749
        %v751 = vpop.f32.mrb[0].mxu0
        %752 = vmatprep.mubr.bf16.mxu0 0
        %753 = vmatmul.mubr.bf16.gmra.mrb[0].mxu0 %v624
        %v754 = vpop.f32.mrb[0].mxu0
        %v755 = vadd.f32 %v646, %v754
        %v756 = vpop.f32.mrb[0].mxu0
        %v757 = vpop.f32.mrb[0].mxu0
        %v758 = vadd.f32 %v646, %v757
        %v759 = vpop.f32.mrb[0].mxu0
        %760 = vdwg.mxu0
        %v761 = vpack.c.bf16 %v734, %v731
        %v762 = vpack.c.bf16 %v742, %v739
        %v763 = vpack.c.bf16 %v750, %v747
        %v764 = vpack.c.bf16 %v758, %v755
        %v769 = vunpack.c.l.b16 %v761
        %v770 = vunpack.c.h.b16 %v761
        %v771 = vunpack.c.l.b16 %v762
        %v772 = vunpack.c.h.b16 %v762
        %v773 = vunpack.c.l.b16 %v763
        %v774 = vunpack.c.h.b16 %v763
        %v775 = vunpack.c.l.b16 %v764
        %v776 = vunpack.c.h.b16 %v764
        %v777 = vpack.c.b16 %v769, %v769
        %v778 = vpack.c.b16 %v770, %v770
        %v779 = vpack.c.b16 %v771, %v771
        %v780 = vpack.c.b16 %v772, %v772
        %v781 = vpack.c.b16 %v773, %v773
        %v782 = vpack.c.b16 %v774, %v774
        %v783 = vpack.c.b16 %v775, %v775
        %v784 = vpack.c.b16 %v776, %v776
        %793 = vst [vmem:[%s474] sm:$0xf] %v777
        %794 = vst [vmem:[%s474 + $0x4] sm:$0xf] %v778
        %795 = vst [vmem:[%s474 + $0x8] sm:$0xf] %v779
        %796 = vst [vmem:[%s474 + $0xc] sm:$0xf] %v780
        %797 = vst [vmem:[%s474 + $0x10] sm:$0xf] %v781
        %798 = vst [vmem:[%s474 + $0x14] sm:$0xf] %v782
        %799 = vst [vmem:[%s474 + $0x18] sm:$0xf] %v783
        %800 = vst [vmem:[%s474 + $0x1c] sm:$0xf] %v784
        %v801 = vld [vmem:[#allocation7] sm:$0xf]
        %v802 = vld [vmem:[#allocation7 + $0x4] sm:$0xf]
        %v803 = vld [vmem:[#allocation7 + $0x8] sm:$0xf]
        %v804 = vld [vmem:[#allocation7 + $0xc] sm:$0xf]
        %v805 = vld [vmem:[#allocation7 + $0x10] sm:$0xf]
        %v806 = vld [vmem:[#allocation7 + $0x14] sm:$0xf]
        %v807 = vld [vmem:[#allocation7 + $0x18] sm:$0xf]
        %v808 = vld [vmem:[#allocation7 + $0x1c] sm:$0xf]
        %v809 = vld [vmem:[#allocation7 + $0x20] sm:$0xf]
        %v810 = vld [vmem:[#allocation7 + $0x24] sm:$0xf]
        %v811 = vld [vmem:[#allocation7 + $0x28] sm:$0xf]
        %v812 = vld [vmem:[#allocation7 + $0x2c] sm:$0xf]
        %v813 = vld [vmem:[#allocation7 + $0x30] sm:$0xf]
        %v814 = vld [vmem:[#allocation7 + $0x34] sm:$0xf]
        %v815 = vld [vmem:[#allocation7 + $0x38] sm:$0xf]
        %v816 = vld [vmem:[#allocation7 + $0x3c] sm:$0xf]
        %v817 = vld [vmem:[%s6] sm:$0x1]
        %v819 = vlaneseq
        %v820 = vshrl.u32 %v819, 7
        %v821 = vsub.s32 0, %v820
        %v822 = vrot.slane %v817, %v821
        %v840 = vunpack.c.l.b16 %v801
        %v841 = vunpack.c.l.b16 %v802
        %v842 = vunpack.c.l.b16 %v803
        %v843 = vunpack.c.l.b16 %v804
        %v844 = vunpack.c.l.b16 %v805
        %v845 = vunpack.c.l.b16 %v806
        %v846 = vunpack.c.l.b16 %v807
        %v847 = vunpack.c.l.b16 %v808
        %v848 = vunpack.c.l.b16 %v809
        %v849 = vunpack.c.l.b16 %v810
        %v850 = vunpack.c.l.b16 %v811
        %v851 = vunpack.c.l.b16 %v812
        %v852 = vunpack.c.l.b16 %v813
        %v853 = vunpack.c.l.b16 %v814
        %v854 = vunpack.c.l.b16 %v815
        %v855 = vunpack.c.l.b16 %v816
        %v856 = vpack.c.b16 %v841, %v840
        %v857 = vpack.c.b16 %v843, %v842
        %v858 = vpack.c.b16 %v845, %v844
        %v859 = vpack.c.b16 %v847, %v846
        %v860 = vpack.c.b16 %v849, %v848
        %v861 = vpack.c.b16 %v851, %v850
        %v862 = vpack.c.b16 %v853, %v852
        %v863 = vpack.c.b16 %v855, %v854
        %872 = vmatprep.subr.bf16.mxu0 0
        %873 = vmatpush1.bf16.msra.mxu0 %v856
        %874 = vmatprep.subr.bf16.mxu0 0
        %875 = vmatpush1.bf16.msra.mxu0 %v857
        %876 = vmatprep.subr.bf16.mxu0 0
        %877 = vmatpush1.bf16.msra.mxu0 %v858
        %878 = vmatprep.subr.bf16.mxu0 0
        %879 = vmatpush1.bf16.msra.mxu0 %v859
        %880 = vmatprep.subr.bf16.mxu0 0
        %881 = vmatpush1.bf16.msra.mxu0 %v860
        %882 = vmatprep.subr.bf16.mxu0 0
        %883 = vmatpush1.bf16.msra.mxu0 %v861
        %884 = vmatprep.subr.bf16.mxu0 0
        %885 = vmatpush1.bf16.msra.mxu0 %v862
        %886 = vmatprep.subr.bf16.mxu0 0
        %887 = vmatpush1.bf16.msra.mxu0 %v863
        %888 = vmatprep.subr.bf16.mxu0 0
        %889 = vmatpush1.bf16.msra.mxu0 0
        %890 = vmatprep.subr.bf16.mxu0 0
        %891 = vmatpush1.bf16.msra.mxu0 0
        %892 = vmatprep.subr.bf16.mxu0 0
        %893 = vmatpush1.bf16.msra.mxu0 0
        %894 = vmatprep.subr.bf16.mxu0 0
        %895 = vmatpush1.bf16.msra.mxu0 0
        %896 = vmatprep.subr.bf16.mxu0 0
        %897 = vmatpush1.bf16.msra.mxu0 0
        %898 = vmatprep.subr.bf16.mxu0 0
        %899 = vmatpush1.bf16.msra.mxu0 0
        %900 = vmatprep.subr.bf16.mxu0 0
        %901 = vmatpush1.bf16.msra.mxu0 0
        %902 = vmatprep.subr.bf16.mxu0 0
        %903 = vmatpush1.bf16.msra.mxu0 0
        %904 = vmatprep.mubr.bf16.mxu0 0
        %905 = vmatmul.mubr.bf16.gmra.mrb[0].mxu0 %v621
        %v906 = vpop.f32.mrb[0].mxu0
        %v907 = vadd.f32 %v822, %v906
        %v908 = vpop.f32.mrb[0].mxu0
        %v909 = vpop.f32.mrb[0].mxu0
        %v910 = vadd.f32 %v822, %v909
        %v911 = vpop.f32.mrb[0].mxu0
        %912 = vmatprep.mubr.bf16.mxu0 0
        %913 = vmatmul.mubr.bf16.gmra.mrb[0].mxu0 %v622
        %v914 = vpop.f32.mrb[0].mxu0
        %v915 = vadd.f32 %v822, %v914
        %v916 = vpop.f32.mrb[0].mxu0
        %v917 = vpop.f32.mrb[0].mxu0
        %v918 = vadd.f32 %v822, %v917
        %v919 = vpop.f32.mrb[0].mxu0
        %920 = vmatprep.mubr.bf16.mxu0 0
        %921 = vmatmul.mubr.bf16.gmra.mrb[0].mxu0 %v623
        %v922 = vpop.f32.mrb[0].mxu0
        %v923 = vadd.f32 %v822, %v922
        %v924 = vpop.f32.mrb[0].mxu0
        %v925 = vpop.f32.mrb[0].mxu0
        %v926 = vadd.f32 %v822, %v925
        %v927 = vpop.f32.mrb[0].mxu0
        %928 = vmatprep.mubr.bf16.mxu0 0
        %929 = vmatmul.mubr.bf16.gmra.mrb[0].mxu0 %v624
        %v930 = vpop.f32.mrb[0].mxu0
        %v931 = vadd.f32 %v822, %v930
        %v932 = vpop.f32.mrb[0].mxu0
        %v933 = vpop.f32.mrb[0].mxu0
        %v934 = vadd.f32 %v822, %v933
        %v935 = vpop.f32.mrb[0].mxu0
        %936 = vdwg.mxu0
        %v937 = vpack.c.bf16 %v910, %v907
        %v938 = vpack.c.bf16 %v918, %v915
        %v939 = vpack.c.bf16 %v926, %v923
        %v940 = vpack.c.bf16 %v934, %v931
        %v945 = vunpack.c.l.b16 %v937
        %v946 = vunpack.c.h.b16 %v937
        %v947 = vunpack.c.l.b16 %v938
        %v948 = vunpack.c.h.b16 %v938
        %v949 = vunpack.c.l.b16 %v939
        %v950 = vunpack.c.h.b16 %v939
        %v951 = vunpack.c.l.b16 %v940
        %v952 = vunpack.c.h.b16 %v940
        %v953 = vpack.c.b16 %v945, %v945
        %v954 = vpack.c.b16 %v946, %v946
        %v955 = vpack.c.b16 %v947, %v947
        %v956 = vpack.c.b16 %v948, %v948
        %v957 = vpack.c.b16 %v949, %v949
        %v958 = vpack.c.b16 %v950, %v950
        %v959 = vpack.c.b16 %v951, %v951
        %v960 = vpack.c.b16 %v952, %v952
        %969 = vst [vmem:[%s481] sm:$0xf] %v953
        %970 = vst [vmem:[%s481 + $0x4] sm:$0xf] %v954
        %971 = vst [vmem:[%s481 + $0x8] sm:$0xf] %v955
        %972 = vst [vmem:[%s481 + $0xc] sm:$0xf] %v956
        %973 = vst [vmem:[%s481 + $0x10] sm:$0xf] %v957
        %974 = vst [vmem:[%s481 + $0x14] sm:$0xf] %v958
        %975 = vst [vmem:[%s481 + $0x18] sm:$0xf] %v959
        %976 = vst [vmem:[%s481 + $0x1c] sm:$0xf] %v960
        %v977 = vld [vmem:[#allocation8] sm:$0xf]
        %v978 = vld [vmem:[#allocation8 + $0x4] sm:$0xf]
        %v979 = vld [vmem:[#allocation8 + $0x8] sm:$0xf]
        %v980 = vld [vmem:[#allocation8 + $0xc] sm:$0xf]
        %v981 = vld [vmem:[#allocation8 + $0x10] sm:$0xf]
        %v982 = vld [vmem:[#allocation8 + $0x14] sm:$0xf]
        %v983 = vld [vmem:[#allocation8 + $0x18] sm:$0xf]
        %v984 = vld [vmem:[#allocation8 + $0x1c] sm:$0xf]
        %v985 = vld [vmem:[#allocation8 + $0x20] sm:$0xf]
        %v986 = vld [vmem:[#allocation8 + $0x24] sm:$0xf]
        %v987 = vld [vmem:[#allocation8 + $0x28] sm:$0xf]
        %v988 = vld [vmem:[#allocation8 + $0x2c] sm:$0xf]
        %v989 = vld [vmem:[#allocation8 + $0x30] sm:$0xf]
        %v990 = vld [vmem:[#allocation8 + $0x34] sm:$0xf]
        %v991 = vld [vmem:[#allocation8 + $0x38] sm:$0xf]
        %v992 = vld [vmem:[#allocation8 + $0x3c] sm:$0xf]
        %v993 = vld [vmem:[%s8] sm:$0x1]
        %v995 = vlaneseq
        %v996 = vshrl.u32 %v995, 7
        %v997 = vsub.s32 0, %v996
        %v998 = vrot.slane %v993, %v997
        %v1016 = vunpack.c.l.b16 %v977
        %v1017 = vunpack.c.l.b16 %v978
        %v1018 = vunpack.c.l.b16 %v979
        %v1019 = vunpack.c.l.b16 %v980
        %v1020 = vunpack.c.l.b16 %v981
        %v1021 = vunpack.c.l.b16 %v982
        %v1022 = vunpack.c.l.b16 %v983
        %v1023 = vunpack.c.l.b16 %v984
        %v1024 = vunpack.c.l.b16 %v985
        %v1025 = vunpack.c.l.b16 %v986
        %v1026 = vunpack.c.l.b16 %v987
        %v1027 = vunpack.c.l.b16 %v988
        %v1028 = vunpack.c.l.b16 %v989
        %v1029 = vunpack.c.l.b16 %v990
        %v1030 = vunpack.c.l.b16 %v991
        %v1031 = vunpack.c.l.b16 %v992
        %v1032 = vpack.c.b16 %v1017, %v1016
        %v1033 = vpack.c.b16 %v1019, %v1018
        %v1034 = vpack.c.b16 %v1021, %v1020
        %v1035 = vpack.c.b16 %v1023, %v1022
        %v1036 = vpack.c.b16 %v1025, %v1024
        %v1037 = vpack.c.b16 %v1027, %v1026
        %v1038 = vpack.c.b16 %v1029, %v1028
        %v1039 = vpack.c.b16 %v1031, %v1030
        %1048 = vmatprep.subr.bf16.mxu0 0
        %1049 = vmatpush1.bf16.msra.mxu0 %v1032
        %1050 = vmatprep.subr.bf16.mxu0 0
        %1051 = vmatpush1.bf16.msra.mxu0 %v1033
        %1052 = vmatprep.subr.bf16.mxu0 0
        %1053 = vmatpush1.bf16.msra.mxu0 %v1034
        %1054 = vmatprep.subr.bf16.mxu0 0
        %1055 = vmatpush1.bf16.msra.mxu0 %v1035
        %1056 = vmatprep.subr.bf16.mxu0 0
        %1057 = vmatpush1.bf16.msra.mxu0 %v1036
        %1058 = vmatprep.subr.bf16.mxu0 0
        %1059 = vmatpush1.bf16.msra.mxu0 %v1037
        %1060 = vmatprep.subr.bf16.mxu0 0
        %1061 = vmatpush1.bf16.msra.mxu0 %v1038
        %1062 = vmatprep.subr.bf16.mxu0 0
        %1063 = vmatpush1.bf16.msra.mxu0 %v1039
        %1064 = vmatprep.subr.bf16.mxu0 0
        %1065 = vmatpush1.bf16.msra.mxu0 0
        %1066 = vmatprep.subr.bf16.mxu0 0
        %1067 = vmatpush1.bf16.msra.mxu0 0
        %1068 = vmatprep.subr.bf16.mxu0 0
        %1069 = vmatpush1.bf16.msra.mxu0 0
        %1070 = vmatprep.subr.bf16.mxu0 0
        %1071 = vmatpush1.bf16.msra.mxu0 0
        %1072 = vmatprep.subr.bf16.mxu0 0
        %1073 = vmatpush1.bf16.msra.mxu0 0
        %1074 = vmatprep.subr.bf16.mxu0 0
        %1075 = vmatpush1.bf16.msra.mxu0 0
        %1076 = vmatprep.subr.bf16.mxu0 0
        %1077 = vmatpush1.bf16.msra.mxu0 0
        %1078 = vmatprep.subr.bf16.mxu0 0
        %1079 = vmatpush1.bf16.msra.mxu0 0
        %1080 = vmatprep.mubr.bf16.mxu0 0
        %1081 = vmatmul.mubr.bf16.gmra.mrb[0].mxu0 %v621
        %v1082 = vpop.f32.mrb[0].mxu0
        %v1083 = vadd.f32 %v998, %v1082
        %v1084 = vpop.f32.mrb[0].mxu0
        %v1085 = vpop.f32.mrb[0].mxu0
        %v1086 = vadd.f32 %v998, %v1085
        %v1087 = vpop.f32.mrb[0].mxu0
        %1088 = vmatprep.mubr.bf16.mxu0 0
        %1089 = vmatmul.mubr.bf16.gmra.mrb[0].mxu0 %v622
        %v1090 = vpop.f32.mrb[0].mxu0
        %v1091 = vadd.f32 %v998, %v1090
        %v1092 = vpop.f32.mrb[0].mxu0
        %v1093 = vpop.f32.mrb[0].mxu0
        %v1094 = vadd.f32 %v998, %v1093
        %v1095 = vpop.f32.mrb[0].mxu0
        %1096 = vmatprep.mubr.bf16.mxu0 0
        %1097 = vmatmul.mubr.bf16.gmra.mrb[0].mxu0 %v623
        %v1098 = vpop.f32.mrb[0].mxu0
        %v1099 = vadd.f32 %v998, %v1098
        %v1100 = vpop.f32.mrb[0].mxu0
        %v1101 = vpop.f32.mrb[0].mxu0
        %v1102 = vadd.f32 %v998, %v1101
        %v1103 = vpop.f32.mrb[0].mxu0
        %1104 = vmatprep.mubr.bf16.mxu0 0
        %1105 = vmatmul.mubr.bf16.gmra.mrb[0].mxu0 %v624
        %v1106 = vpop.f32.mrb[0].mxu0
        %v1107 = vadd.f32 %v998, %v1106
        %v1108 = vpop.f32.mrb[0].mxu0
        %v1109 = vpop.f32.mrb[0].mxu0
        %v1110 = vadd.f32 %v998, %v1109
        %v1111 = vpop.f32.mrb[0].mxu0
        %1112 = vdwg.mxu0
        %v1113 = vpack.c.bf16 %v1086, %v1083
        %v1114 = vpack.c.bf16 %v1094, %v1091
        %v1115 = vpack.c.bf16 %v1102, %v1099
        %v1116 = vpack.c.bf16 %v1110, %v1107
        %v1121 = vunpack.c.l.b16 %v1113
        %v1122 = vunpack.c.h.b16 %v1113
        %v1123 = vunpack.c.l.b16 %v1114
        %v1124 = vunpack.c.h.b16 %v1114
        %v1125 = vunpack.c.l.b16 %v1115
        %v1126 = vunpack.c.h.b16 %v1115
        %v1127 = vunpack.c.l.b16 %v1116
        %v1128 = vunpack.c.h.b16 %v1116
        %v1129 = vpack.c.b16 %v1121, %v1121
        %v1130 = vpack.c.b16 %v1122, %v1122
        %v1131 = vpack.c.b16 %v1123, %v1123
        %v1132 = vpack.c.b16 %v1124, %v1124
        %v1133 = vpack.c.b16 %v1125, %v1125
        %v1134 = vpack.c.b16 %v1126, %v1126
        %v1135 = vpack.c.b16 %v1127, %v1127
        %v1136 = vpack.c.b16 %v1128, %v1128
        %1145 = vst [vmem:[%s488] sm:$0xf] %v1129
        %1146 = vst [vmem:[%s488 + $0x4] sm:$0xf] %v1130
        %1147 = vst [vmem:[%s488 + $0x8] sm:$0xf] %v1131
        %1148 = vst [vmem:[%s488 + $0xc] sm:$0xf] %v1132
        %1149 = vst [vmem:[%s488 + $0x10] sm:$0xf] %v1133
        %1150 = vst [vmem:[%s488 + $0x14] sm:$0xf] %v1134
        %1151 = vst [vmem:[%s488 + $0x18] sm:$0xf] %v1135
        %1152 = vst [vmem:[%s488 + $0x1c] sm:$0xf] %v1136
        %s1153 = sand.u32 %s252, 1
        %s1154 = scalar_lea.sflag [#allocation4], %s1153
        %s1155 = sand.u32 %s252, 1
        %s1156 = smul.addr %s1155, 32
        %s1157 = scalar_lea.vmem [#allocation10], %s1156
        %s1158 = sand.u32 %s34, 1
        %s1159 = scalar_lea.sflag [#allocation12], %s1158
        %s1160 = sand.u32 %s280, 1
        %s1161 = smul.addr %s1160, 32
        %s1162 = scalar_lea.vmem [#allocation11], %s1161
        %s1163 = sand.u32 %s34, 1
        %s1164 = scalar_lea.sflag [#allocation12], %s1163
        %s1165 = sand.u32 %s308, 1
        %s1166 = smul.addr %s1165, 32
        %s1167 = scalar_lea.vmem [#allocation13], %s1166
        // Predicated region
        $region73: #{tpu_custom_call.1} parent=55 // pred_check
          %p1168 = pneg %p262
        $region74: #{tpu_custom_call.1} parent=55 // pred_check_branch
          %1170 = sbr.rel (%p1168) target = $region76
        $region75: #{tpu_custom_call.1} parent=55 // pred_region
          %s1171 = smul.u32 8, %s39
          %s1173 = ssub.s32 512, 512
          %1174 = vsyncadd %s1154, %s1173
          %s1175 = smul.addr %s38, 8
          %s1176 = sadd.s32 %s1171, %s1175
          %s1177 = smul.addr %s1176, 64
          %s1178 = scalar_lea.hbm %s9, %s1177
          %s1179 = sshll.u32 %s1157, 4
          %s1180 = int_to_ptr.vmem [resolvable:$true] %s1179
          %1185 = dma.vmem_to_hbm [thread:$0]  %s1180, 512, %s1178, %s1154, 64, 64, 4
        $region76: #{tpu_custom_call.1} parent=55 // pred_fallthru
          _
        // Predicated region
        $region77: #{tpu_custom_call.1} parent=55 // pred_check
          %p1186 = pneg %p290
        $region78: #{tpu_custom_call.1} parent=55 // pred_check_branch
          %1188 = sbr.rel (%p1186) target = $region80
        $region79: #{tpu_custom_call.1} parent=55 // pred_region
          %s1189 = smul.u32 8, %s39
          %s1191 = ssub.s32 512, 512
          %1192 = vsyncadd %s1159, %s1191
          %s1193 = smul.addr %s38, 8
          %s1194 = sadd.s32 %s1189, %s1193
          %s1195 = smul.addr %s1194, 64
          %s1196 = scalar_lea.hbm %s10, %s1195
          %s1197 = sshll.u32 %s1162, 4
          %s1198 = int_to_ptr.vmem [resolvable:$true] %s1197
          %1203 = dma.vmem_to_hbm [thread:$0]  %s1198, 512, %s1196, %s1159, 64, 64, 4
        $region80: #{tpu_custom_call.1} parent=55 // pred_fallthru
          _
        // Predicated region
        $region81: #{tpu_custom_call.1} parent=55 // pred_check
          %p1204 = pneg %p318
        $region82: #{tpu_custom_call.1} parent=55 // pred_check_branch
          %1206 = sbr.rel (%p1204) target = $region84
        $region83: #{tpu_custom_call.1} parent=55 // pred_region
          %s1207 = smul.u32 8, %s39
          %s1209 = ssub.s32 512, 512
          %1210 = vsyncadd %s1164, %s1209
          %s1211 = smul.addr %s38, 8
          %s1212 = sadd.s32 %s1207, %s1211
          %s1213 = smul.addr %s1212, 64
          %s1214 = scalar_lea.hbm %s11, %s1213
          %s1215 = sshll.u32 %s1167, 4
          %s1216 = int_to_ptr.vmem [resolvable:$true] %s1215
          %1221 = dma.vmem_to_hbm [thread:$0]  %s1216, 512, %s1214, %s1164, 64, 64, 4
        $region84: #{tpu_custom_call.1} parent=55 // pred_fallthru
          _
      $region56: #{tpu_custom_call.1} parent=5 // pred_fallthru
        _
      %p1222 = scmp.le.s32.totalorder 2, %s29
      // Predicated region
      $region85: #{tpu_custom_call.1} parent=5 // pred_check
        %p1223 = pneg %p1222
      $region86: #{tpu_custom_call.1} parent=5 // pred_check_branch
        %1225 = sbr.rel (%p1223) target = $region88
      $region87: #{tpu_custom_call.1} parent=5 // pred_region
        %s1226 = ssub.s32 %s29, 2
        // Predicated region
        $region89: #{tpu_custom_call.1} parent=87 // pred_check
          %p1227 = pneg %p268
        $region90: #{tpu_custom_call.1} parent=87 // pred_check_branch
          %1229 = sbr.rel (%p1227) target = $region92
        $region91: #{tpu_custom_call.1} parent=87 // pred_region
          %s1230 = sand.u32 %s253, 1
          %s1231 = scalar_lea.sflag [#allocation4], %s1230
          %s1232 = sand.u32 %s253, 1
          %s1233 = smul.addr %s1232, 32
          %s1234 = scalar_lea.vmem [#allocation10], %s1233
          %1235 = dma.done %s1231, 512
        $region92: #{tpu_custom_call.1} parent=87 // pred_fallthru
          _
        // Predicated region
        $region93: #{tpu_custom_call.1} parent=87 // pred_check
          %p1236 = pneg %p296
        $region94: #{tpu_custom_call.1} parent=87 // pred_check_branch
          %1238 = sbr.rel (%p1236) target = $region96
        $region95: #{tpu_custom_call.1} parent=87 // pred_region
          %s1239 = sand.u32 %s35, 1
          %s1240 = scalar_lea.sflag [#allocation12], %s1239
          %s1241 = sand.u32 %s281, 1
          %s1242 = smul.addr %s1241, 32
          %s1243 = scalar_lea.vmem [#allocation11], %s1242
          %1244 = dma.done %s1240, 512
        $region96: #{tpu_custom_call.1} parent=87 // pred_fallthru
          _
        // Predicated region
        $region97: #{tpu_custom_call.1} parent=87 // pred_check
          %p1245 = pneg %p324
        $region98: #{tpu_custom_call.1} parent=87 // pred_check_branch
          %1247 = sbr.rel (%p1245) target = $region100
        $region99: #{tpu_custom_call.1} parent=87 // pred_region
          %s1248 = sand.u32 %s35, 1
          %s1249 = scalar_lea.sflag [#allocation12], %s1248
          %s1250 = sand.u32 %s309, 1
          %s1251 = smul.addr %s1250, 32
          %s1252 = scalar_lea.vmem [#allocation13], %s1251
          %1253 = dma.done %s1249, 512
        $region100: #{tpu_custom_call.1} parent=87 // pred_fallthru
          _
      $region88: #{tpu_custom_call.1} parent=5 // pred_fallthru
        _
    $region6: #{tpu_custom_call.1} parent=1 // loop_footer
      %s33 = sadd.s32 1, %s29
    $region7: #{tpu_custom_call.1} parent=1 // loop_footer_branch
      %28 = sbr.rel target = $region3
    $region8: #{tpu_custom_call.1} parent=1 // loop_exit
      _
    %1254 = vsyncpa [#allocation3], 1
    %s1255 = scalar_lea.sflag [#allocation3], 1
    %1256 = vsyncpa %s1255, 1
    %1257 = vsyncpa [#allocation6], 1
    %1258 = vsyncpa [#allocation9], 1
    %1259 = vsyncpa [#allocation4], 1
    %s1260 = scalar_lea.sflag [#allocation4], 1
    %1261 = vsyncpa %s1260, 1
    %1262 = vsyncpa [#allocation12], 1
    %s1263 = scalar_lea.sflag [#allocation12], 1
    %1264 = vsyncpa %s1263, 1

</llo_original>
